<compile_context>
chip_gen: v5e
topology: v5e:2x2
jax: 0.10.0
libtpu: 0.0.40
codegen_flags: <defaults>
</compile_context>

<pallas_src>
import functools

import jax
import jax.numpy as jnp
from jax import lax
from jax.experimental import pallas as pl
from jax.experimental.pallas import tpu as pltpu


# ----------------------------- small helpers --------------------------------


def _round_up(n, m):
    return ((n + m - 1) // m) * m


def _pad2(a, rows, cols):
    r, c = a.shape
    return jnp.pad(a, ((0, rows - r), (0, cols - c))).astype(jnp.float32)


def _col(v, rows):
    # 1-D (C,) parameter -> zero-padded f32 column (rows, 1)
    return jnp.pad(v, (0, rows - v.shape[0])).reshape(rows, 1).astype(jnp.float32)


# ------------------------------ Pallas kernel --------------------------------


def _sspa_kernel(gp_ref, xf_ref, wch_ref, bch_ref, w1_ref, b1_ref, w2_ref,
                 b2_ref, wsp_ref, bsp_ref, wpw_ref, bpw_ref, o_ref, *,
                 tap_offsets, mo):
    """Fused SSPA forward for one batch element (channel-major layout).

    gp_ref : (1, K9p, 1)       per-tap spatial means of x (GAP linearity)
    xf_ref : (1, Cin_p, L)     zero-padded, flattened (Hp*Wp) input, bf16
    wch_ref: (Cout_p, K9p)     conv_ch 3x3 weight as a matrix (f32)
    wsp_ref: (9, Cout_p, Cin_p) conv_sp 3x3 weight per tap, BN pre-folded (bf16)
    wpw_ref: (Cout_p, Cout_p)  conv_sp 1x1 weight (f32)
    o_ref  : (1, Cout_p, Mo)   NC(HW)-layout output (lane-dense along Mo)
    """
    # ---- branch 1: channel attention (tiny; exact GAP via linearity) --------
    gp = gp_ref[0]                                                  # (K9p, 1)
    gch = jnp.dot(wch_ref[...], gp,
                  preferred_element_type=jnp.float32) + bch_ref[...]
    h = jnp.maximum(
        jnp.dot(w1_ref[...], gch,
                preferred_element_type=jnp.float32) + b1_ref[...], 0.0)
    attn = jax.nn.sigmoid(
        jnp.dot(w2_ref[...], h,
                preferred_element_type=jnp.float32) + b2_ref[...])  # (Cout_p,1)

    # ---- branch 2: 3x3 conv (BN folded) as 9 shifted matmuls ----------------
    cout_p = o_ref.shape[1]
    acc = jnp.zeros((cout_p, mo), jnp.float32)
    for t, s in enumerate(tap_offsets):            # static 9-tap unrolled loop
        xs = xf_ref[0, :, s:s + mo]                # (Cin_p, Mo) bf16, lane-dense
        acc = acc + jnp.dot(wsp_ref[t], xs,
                            preferred_element_type=jnp.float32)
    y = jnp.maximum(acc + bsp_ref[...], 0.0)       # conv bias + BN shift, ReLU
    y = jnp.dot(wpw_ref[...], y,
                preferred_element_type=jnp.float32) + bpw_ref[...]  # 1x1 conv
    o_ref[0] = (y * attn).astype(o_ref.dtype)      # x * attn.expand_as(x)


# --------------------------------- wrapper -----------------------------------


def sspa_forward(x_nchw, params, *, conv_dtype=jnp.bfloat16):
    B, Cin, H, W = x_nchw.shape
    Cout = params["conv_sp_b1"].shape[0]
    Hp, Wp = H + 2, W + 2
    Mp, Mo = Hp * Wp, H * Wp                       # padded / extended-output sizes
    Cin_p = _round_up(Cin, 8)
    Cout_p = _round_up(Cout, 8)
    K9 = 9 * Cin
    K9p = _round_up(K9, 128)
    L = _round_up(Mp + 2, 128)                     # +2 guard zeros, lane-padded

    x = x_nchw.astype(jnp.float32)
    xp = jnp.pad(x, ((0, 0), (0, 0), (1, 1), (1, 1)))          # (B,Cin,Hp,Wp)

    # GAP linearity: mean_HW(conv_ch(x)) = (per-tap spatial means of x)@Wch + b.
    gp = jnp.stack([jnp.mean(xp[:, :, dy:dy + H, dx:dx + W], axis=(2, 3))
                    for dy in range(3) for dx in range(3)], axis=1)  # (B,9,Cin)
    gp = jnp.pad(gp.reshape(B, K9), ((0, 0), (0, K9p - K9))).reshape(B, K9p, 1)

    # Channel-major flattened input with one guard zero in front of the
    # flattened (Hp*Wp) axis so all 9 conv-tap windows are in-bounds slices.
    xf = jnp.pad(xp, ((0, 0), (0, Cin_p - Cin), (0, 0), (0, 0)))
    xf = xf.reshape(B, Cin_p, Mp)
    xf = jnp.pad(xf, ((0, 0), (0, 0), (1, L - Mp - 1))).astype(conv_dtype)

    # ---- parameters -> kernel layouts ---------------------------------------
    # torch conv weight (Cout,Cin,3,3) -> (Cout, 9*Cin), tap-major / Cin-minor.
    wch = params["conv_ch_w"].transpose(0, 2, 3, 1).reshape(Cout, K9)
    wch = _pad2(wch, Cout_p, K9p)
    bch = _col(params["conv_ch_b"], Cout_p)
    w1 = _pad2(params["fc1_w"], Cout_p, Cout_p)    # torch Linear layout (out,in)
    b1 = _col(params["fc1_b"], Cout_p)
    w2 = _pad2(params["fc2_w"], Cout_p, Cout_p)
    b2 = _col(params["fc2_b"], Cout_p)

    # Fold eval-mode BatchNorm into the 3x3 conv weights / bias.
    scale, shift = params["bn_scale"], params["bn_shift"]
    wsp = params["conv_sp_w3"] * scale[:, None, None, None]      # (Cout,Cin,3,3)
    wsp = wsp.transpose(2, 3, 0, 1).reshape(9, Cout, Cin)        # per-tap (o,i)
    wsp = jnp.pad(wsp, ((0, 0), (0, Cout_p - Cout),
                        (0, Cin_p - Cin))).astype(conv_dtype)
    bsp = _col(params["conv_sp_b3"] * scale + shift, Cout_p)
    wpw = _pad2(params["conv_sp_w1"], Cout_p, Cout_p)            # 1x1 (out,in)
    bpw = _col(params["conv_sp_b1"], Cout_p)

    # Lane offsets of the 9 taps into the flattened padded input.
    tap_offsets = tuple(ky * Wp + kx for ky in range(3) for kx in range(3))

    def bcast(shape):                      # grid-invariant (weight) block spec
        return pl.BlockSpec(shape, lambda b, _n=len(shape): (0,) * _n)

    kernel = functools.partial(_sspa_kernel, tap_offsets=tap_offsets, mo=Mo)

    flops = 2 * B * Mo * Cout_p * (9 * Cin_p + Cout_p)
    bytes_accessed = (xf.size * xf.dtype.itemsize + B * Cout_p * Mo * 4
                      + gp.size * 4 + wsp.size * wsp.dtype.itemsize
                      + 4 * (wch.size + w1.size + w2.size + wpw.size))

    out_ext = pl.pallas_call(
        kernel,
        out_shape=jax.ShapeDtypeStruct((B, Cout_p, Mo), jnp.float32),
        grid=(B,),
        in_specs=[
            pl.BlockSpec((1, K9p, 1), lambda b: (b, 0, 0)),      # gp
            pl.BlockSpec((1, Cin_p, L), lambda b: (b, 0, 0)),    # xf
            bcast((Cout_p, K9p)), bcast((Cout_p, 1)),            # conv_ch
            bcast((Cout_p, Cout_p)), bcast((Cout_p, 1)),         # fc1
            bcast((Cout_p, Cout_p)), bcast((Cout_p, 1)),         # fc2
            bcast((9, Cout_p, Cin_p)), bcast((Cout_p, 1)),       # conv_sp 3x3+BN
            bcast((Cout_p, Cout_p)), bcast((Cout_p, 1)),         # conv_sp 1x1
        ],
        out_specs=pl.BlockSpec((1, Cout_p, Mo), lambda b: (b, 0, 0)),
        compiler_params=pltpu.CompilerParams(
            dimension_semantics=("parallel",)),
        cost_estimate=pl.CostEstimate(flops=flops,
                                      transcendentals=B * Cout_p,
                                      bytes_accessed=bytes_accessed),
    )(gp, xf, wch, bch, w1, b1, w2, b2, wsp, bsp, wpw, bpw)

    # Output is already channel-major (NCHW-flavoured): drop padded channels
    # and the two junk columns per row produced by the flattened formulation.
    out = out_ext.reshape(B, Cout_p, H, Wp)[:, :Cout, :, 1:W + 1]
    return out


# ------------------------ deterministic parameter init -----------------------


def init_params(key, cin, cout):
    ks = jax.random.split(key, 10)

    def w(k, shape, s):
        return jax.random.normal(k, shape, jnp.float32) * s

    return dict(
        conv_ch_w=w(ks[0], (cout, cin, 3, 3), 0.2),    # torch layout (O,I,kh,kw)
        conv_ch_b=w(ks[1], (cout,), 0.1),
        fc1_w=w(ks[2], (cout, cout), 0.3),             # torch Linear (out, in)
        fc1_b=jnp.zeros((cout,), jnp.float32),
        fc2_w=w(ks[3], (cout, cout), 0.3),
        fc2_b=jnp.zeros((cout,), jnp.float32),
        conv_sp_w3=w(ks[4], (cout, cin, 3, 3), 0.2),
        conv_sp_b3=w(ks[5], (cout,), 0.1),
        conv_sp_w1=w(ks[6], (cout, cout), 0.3),        # 1x1 conv as (out, in)
        conv_sp_b1=w(ks[7], (cout,), 0.1),
        # Eval-mode BatchNorm folded: scale = gamma/sqrt(var+eps),
        # shift = beta - mean*scale. Non-trivial values to exercise the fold.
        bn_scale=0.5 + jax.random.uniform(ks[8], (cout,), jnp.float32),
        bn_shift=w(ks[9], (cout,), 0.1),
    )


# --------------------------------- reference ---------------------------------


def sspa_reference(x, p):
    dn = ("NCHW", "OIHW", "NCHW")

    def conv3(inp, wt):
        return lax.conv_general_dilated(inp, wt, (1, 1), ((1, 1), (1, 1)),
                                        dimension_numbers=dn)

    xc = conv3(x, p["conv_ch_w"]) + p["conv_ch_b"][None, :, None, None]
    gap = xc.mean(axis=(2, 3))                                   # (B, Cout)
    h = jnp.maximum(gap @ p["fc1_w"].T + p["fc1_b"], 0.0)
    attn = jax.nn.sigmoid(h @ p["fc2_w"].T + p["fc2_b"])
    y = conv3(x, p["conv_sp_w3"]) + p["conv_sp_b3"][None, :, None, None]
    y = y * p["bn_scale"][None, :, None, None] + p["bn_shift"][None, :, None, None]
    y = jnp.maximum(y, 0.0)
    y = jnp.einsum("oi,bihw->bohw", p["conv_sp_w1"], y) \
        + p["conv_sp_b1"][None, :, None, None]
    return y * attn[:, :, None, None]


if __name__ == "__main__":
    # B=2 so that `.squeeze()` in the torch module keeps the batch dim.
    B, Cin, Cout, H, W = 2, 4, 8, 16, 16
    key = jax.random.PRNGKey(0)
    kx, kp = jax.random.split(key)
    x = jax.random.normal(kx, (B, Cin, H, W), jnp.float32)
    params = init_params(kp, Cin, Cout)

    out = jax.jit(sspa_forward)(x, params)
    out = jax.block_until_ready(out)
    assert out.shape == (B, Cout, H, W), out.shape

    ref = sspa_reference(x, params)
    max_err = float(jnp.max(jnp.abs(out - ref)))
    if max_err > 5e-2:
        raise AssertionError(f"kernel/reference mismatch: max abs err {max_err}")
    print("KERNEL_OK")
</pallas_src>

<mosaic_0001>
module attributes {stable_mosaic.version = 11 : i64} {
  func.func @_sspa_kernel(%arg0: i32, %arg1: memref<1x128x1xf32, #tpu.memory_space<vmem>>, %arg2: memref<1x8x384xbf16, #tpu.memory_space<vmem>>, %arg3: memref<8x128xf32, #tpu.memory_space<vmem>>, %arg4: memref<8x1xf32, #tpu.memory_space<vmem>>, %arg5: memref<8x8xf32, #tpu.memory_space<vmem>>, %arg6: memref<8x1xf32, #tpu.memory_space<vmem>>, %arg7: memref<8x8xf32, #tpu.memory_space<vmem>>, %arg8: memref<8x1xf32, #tpu.memory_space<vmem>>, %arg9: memref<9x8x8xbf16, #tpu.memory_space<vmem>>, %arg10: memref<8x1xf32, #tpu.memory_space<vmem>>, %arg11: memref<8x8xf32, #tpu.memory_space<vmem>>, %arg12: memref<8x1xf32, #tpu.memory_space<vmem>>, %arg13: memref<1x8x288xf32, #tpu.memory_space<vmem>>) attributes {dimension_semantics = [#tpu.dimension_semantics<parallel>], iteration_bounds = array<i64: 2>, scalar_prefetch = 0 : i64, scratch_operands = 0 : i64, tpu.core_type = #tpu.core_type<tc>, window_params = [{transform_indices = @transform_0, window_bounds = array<i64: 1, 128, 1>}, {transform_indices = @transform_1, window_bounds = array<i64: 1, 8, 384>}, {pipeline_mode = #tpu.pipeline_mode<synchronous>, transform_indices = @transform_2, window_bounds = array<i64: 8, 128>}, {pipeline_mode = #tpu.pipeline_mode<synchronous>, transform_indices = @transform_3, window_bounds = array<i64: 8, 1>}, {pipeline_mode = #tpu.pipeline_mode<synchronous>, transform_indices = @transform_4, window_bounds = array<i64: 8, 8>}, {pipeline_mode = #tpu.pipeline_mode<synchronous>, transform_indices = @transform_5, window_bounds = array<i64: 8, 1>}, {pipeline_mode = #tpu.pipeline_mode<synchronous>, transform_indices = @transform_6, window_bounds = array<i64: 8, 8>}, {pipeline_mode = #tpu.pipeline_mode<synchronous>, transform_indices = @transform_7, window_bounds = array<i64: 8, 1>}, {pipeline_mode = #tpu.pipeline_mode<synchronous>, transform_indices = @transform_8, window_bounds = array<i64: 9, 8, 8>}, {pipeline_mode = #tpu.pipeline_mode<synchronous>, transform_indices = @transform_9, window_bounds = array<i64: 8, 1>}, {pipeline_mode = #tpu.pipeline_mode<synchronous>, transform_indices = @transform_10, window_bounds = array<i64: 8, 8>}, {pipeline_mode = #tpu.pipeline_mode<synchronous>, transform_indices = @transform_11, window_bounds = array<i64: 8, 1>}, {transform_indices = @transform_12, window_bounds = array<i64: 1, 8, 288>}]} {
    %c0 = arith.constant 0 : index
    %c0_0 = arith.constant 0 : index
    %c0_1 = arith.constant 0 : index
    %0 = vector.load %arg1[%c0, %c0_0, %c0_1] : memref<1x128x1xf32, #tpu.memory_space<vmem>>, vector<1x128x1xf32>
    %1 = vector.shape_cast %0 : vector<1x128x1xf32> to vector<128x1xf32>
    %c0_2 = arith.constant 0 : index
    %c0_3 = arith.constant 0 : index
    %2 = vector.load %arg3[%c0_2, %c0_3] : memref<8x128xf32, #tpu.memory_space<vmem>>, vector<8x128xf32>
    %cst = arith.constant dense<0.000000e+00> : vector<8x1xf32>
    %3 = tpu.matmul %2, %1, %cst {dimension_numbers = #tpu.dot_dimension_numbers<[1], [0], [0], [1], [0, 0, 1, 1], [], []>} : vector<8x128xf32>, vector<128x1xf32>, vector<8x1xf32> -> vector<8x1xf32>
    %c0_4 = arith.constant 0 : index
    %c0_5 = arith.constant 0 : index
    %4 = vector.load %arg4[%c0_4, %c0_5] : memref<8x1xf32, #tpu.memory_space<vmem>>, vector<8x1xf32>
    %5 = arith.addf %3, %4 : vector<8x1xf32>
    %c0_6 = arith.constant 0 : index
    %c0_7 = arith.constant 0 : index
    %6 = vector.load %arg5[%c0_6, %c0_7] : memref<8x8xf32, #tpu.memory_space<vmem>>, vector<8x8xf32>
    %cst_8 = arith.constant dense<0.000000e+00> : vector<8x1xf32>
    %7 = tpu.matmul %6, %5, %cst_8 {dimension_numbers = #tpu.dot_dimension_numbers<[1], [0], [0], [1], [0, 0, 1, 1], [], []>} : vector<8x8xf32>, vector<8x1xf32>, vector<8x1xf32> -> vector<8x1xf32>
    %c0_9 = arith.constant 0 : index
    %c0_10 = arith.constant 0 : index
    %8 = vector.load %arg6[%c0_9, %c0_10] : memref<8x1xf32, #tpu.memory_space<vmem>>, vector<8x1xf32>
    %9 = arith.addf %7, %8 : vector<8x1xf32>
    %cst_11 = arith.constant 0.000000e+00 : f32
    %10 = vector.broadcast %cst_11 : f32 to vector<8x1xf32>
    %11 = arith.maximumf %9, %10 : vector<8x1xf32>
    %c0_12 = arith.constant 0 : index
    %c0_13 = arith.constant 0 : index
    %12 = vector.load %arg7[%c0_12, %c0_13] : memref<8x8xf32, #tpu.memory_space<vmem>>, vector<8x8xf32>
    %cst_14 = arith.constant dense<0.000000e+00> : vector<8x1xf32>
    %13 = tpu.matmul %12, %11, %cst_14 {dimension_numbers = #tpu.dot_dimension_numbers<[1], [0], [0], [1], [0, 0, 1, 1], [], []>} : vector<8x8xf32>, vector<8x1xf32>, vector<8x1xf32> -> vector<8x1xf32>
    %c0_15 = arith.constant 0 : index
    %c0_16 = arith.constant 0 : index
    %14 = vector.load %arg8[%c0_15, %c0_16] : memref<8x1xf32, #tpu.memory_space<vmem>>, vector<8x1xf32>
    %15 = arith.addf %13, %14 : vector<8x1xf32>
    %16 = arith.negf %15 : vector<8x1xf32>
    %17 = math.exp %16 : vector<8x1xf32>
    %cst_17 = arith.constant 1.000000e+00 : f32
    %18 = vector.broadcast %cst_17 : f32 to vector<8x1xf32>
    %19 = arith.addf %18, %17 : vector<8x1xf32>
    %20 = arith.divf %18, %19 : vector<8x1xf32>
    %cst_18 = arith.constant 0.000000e+00 : f32
    %21 = vector.broadcast %cst_18 : f32 to vector<8x288xf32>
    %c0_19 = arith.constant 0 : index
    %c0_20 = arith.constant 0 : index
    %c0_21 = arith.constant 0 : index
    %22 = vector.load %arg2[%c0_19, %c0_20, %c0_21] : memref<1x8x384xbf16, #tpu.memory_space<vmem>>, vector<1x8x288xbf16>
    %23 = vector.shape_cast %22 : vector<1x8x288xbf16> to vector<8x288xbf16>
    %c0_22 = arith.constant 0 : index
    %c0_23 = arith.constant 0 : index
    %c0_24 = arith.constant 0 : index
    %24 = vector.load %arg9[%c0_22, %c0_23, %c0_24] : memref<9x8x8xbf16, #tpu.memory_space<vmem>>, vector<1x8x8xbf16>
    %25 = vector.shape_cast %24 : vector<1x8x8xbf16> to vector<8x8xbf16>
    %cst_25 = arith.constant dense<0.000000e+00> : vector<8x288xf32>
    %26 = tpu.matmul %25, %23, %cst_25 {dimension_numbers = #tpu.dot_dimension_numbers<[1], [0], [0], [1], [0, 0, 1, 1], [], []>} : vector<8x8xbf16>, vector<8x288xbf16>, vector<8x288xf32> -> vector<8x288xf32>
    %27 = arith.addf %21, %26 : vector<8x288xf32>
    %c0_26 = arith.constant 0 : index
    %c0_27 = arith.constant 0 : index
    %c1 = arith.constant 1 : index
    %28 = vector.load %arg2[%c0_26, %c0_27, %c1] : memref<1x8x384xbf16, #tpu.memory_space<vmem>>, vector<1x8x288xbf16>
    %29 = vector.shape_cast %28 : vector<1x8x288xbf16> to vector<8x288xbf16>
    %c1_28 = arith.constant 1 : index
    %c0_29 = arith.constant 0 : index
    %c0_30 = arith.constant 0 : index
    %30 = vector.load %arg9[%c1_28, %c0_29, %c0_30] : memref<9x8x8xbf16, #tpu.memory_space<vmem>>, vector<1x8x8xbf16>
    %31 = vector.shape_cast %30 : vector<1x8x8xbf16> to vector<8x8xbf16>
    %cst_31 = arith.constant dense<0.000000e+00> : vector<8x288xf32>
    %32 = tpu.matmul %31, %29, %cst_31 {dimension_numbers = #tpu.dot_dimension_numbers<[1], [0], [0], [1], [0, 0, 1, 1], [], []>} : vector<8x8xbf16>, vector<8x288xbf16>, vector<8x288xf32> -> vector<8x288xf32>
    %33 = arith.addf %27, %32 : vector<8x288xf32>
    %c0_32 = arith.constant 0 : index
    %c0_33 = arith.constant 0 : index
    %c2 = arith.constant 2 : index
    %34 = vector.load %arg2[%c0_32, %c0_33, %c2] : memref<1x8x384xbf16, #tpu.memory_space<vmem>>, vector<1x8x288xbf16>
    %35 = vector.shape_cast %34 : vector<1x8x288xbf16> to vector<8x288xbf16>
    %c2_34 = arith.constant 2 : index
    %c0_35 = arith.constant 0 : index
    %c0_36 = arith.constant 0 : index
    %36 = vector.load %arg9[%c2_34, %c0_35, %c0_36] : memref<9x8x8xbf16, #tpu.memory_space<vmem>>, vector<1x8x8xbf16>
    %37 = vector.shape_cast %36 : vector<1x8x8xbf16> to vector<8x8xbf16>
    %cst_37 = arith.constant dense<0.000000e+00> : vector<8x288xf32>
    %38 = tpu.matmul %37, %35, %cst_37 {dimension_numbers = #tpu.dot_dimension_numbers<[1], [0], [0], [1], [0, 0, 1, 1], [], []>} : vector<8x8xbf16>, vector<8x288xbf16>, vector<8x288xf32> -> vector<8x288xf32>
    %39 = arith.addf %33, %38 : vector<8x288xf32>
    %c0_38 = arith.constant 0 : index
    %c0_39 = arith.constant 0 : index
    %c18 = arith.constant 18 : index
    %40 = vector.load %arg2[%c0_38, %c0_39, %c18] : memref<1x8x384xbf16, #tpu.memory_space<vmem>>, vector<1x8x288xbf16>
    %41 = vector.shape_cast %40 : vector<1x8x288xbf16> to vector<8x288xbf16>
    %c3 = arith.constant 3 : index
    %c0_40 = arith.constant 0 : index
    %c0_41 = arith.constant 0 : index
    %42 = vector.load %arg9[%c3, %c0_40, %c0_41] : memref<9x8x8xbf16, #tpu.memory_space<vmem>>, vector<1x8x8xbf16>
    %43 = vector.shape_cast %42 : vector<1x8x8xbf16> to vector<8x8xbf16>
    %cst_42 = arith.constant dense<0.000000e+00> : vector<8x288xf32>
    %44 = tpu.matmul %43, %41, %cst_42 {dimension_numbers = #tpu.dot_dimension_numbers<[1], [0], [0], [1], [0, 0, 1, 1], [], []>} : vector<8x8xbf16>, vector<8x288xbf16>, vector<8x288xf32> -> vector<8x288xf32>
    %45 = arith.addf %39, %44 : vector<8x288xf32>
    %c0_43 = arith.constant 0 : index
    %c0_44 = arith.constant 0 : index
    %c19 = arith.constant 19 : index
    %46 = vector.load %arg2[%c0_43, %c0_44, %c19] : memref<1x8x384xbf16, #tpu.memory_space<vmem>>, vector<1x8x288xbf16>
    %47 = vector.shape_cast %46 : vector<1x8x288xbf16> to vector<8x288xbf16>
    %c4 = arith.constant 4 : index
    %c0_45 = arith.constant 0 : index
    %c0_46 = arith.constant 0 : index
    %48 = vector.load %arg9[%c4, %c0_45, %c0_46] : memref<9x8x8xbf16, #tpu.memory_space<vmem>>, vector<1x8x8xbf16>
    %49 = vector.shape_cast %48 : vector<1x8x8xbf16> to vector<8x8xbf16>
    %cst_47 = arith.constant dense<0.000000e+00> : vector<8x288xf32>
    %50 = tpu.matmul %49, %47, %cst_47 {dimension_numbers = #tpu.dot_dimension_numbers<[1], [0], [0], [1], [0, 0, 1, 1], [], []>} : vector<8x8xbf16>, vector<8x288xbf16>, vector<8x288xf32> -> vector<8x288xf32>
    %51 = arith.addf %45, %50 : vector<8x288xf32>
    %c0_48 = arith.constant 0 : index
    %c0_49 = arith.constant 0 : index
    %c20 = arith.constant 20 : index
    %52 = vector.load %arg2[%c0_48, %c0_49, %c20] : memref<1x8x384xbf16, #tpu.memory_space<vmem>>, vector<1x8x288xbf16>
    %53 = vector.shape_cast %52 : vector<1x8x288xbf16> to vector<8x288xbf16>
    %c5 = arith.constant 5 : index
    %c0_50 = arith.constant 0 : index
    %c0_51 = arith.constant 0 : index
    %54 = vector.load %arg9[%c5, %c0_50, %c0_51] : memref<9x8x8xbf16, #tpu.memory_space<vmem>>, vector<1x8x8xbf16>
    %55 = vector.shape_cast %54 : vector<1x8x8xbf16> to vector<8x8xbf16>
    %cst_52 = arith.constant dense<0.000000e+00> : vector<8x288xf32>
    %56 = tpu.matmul %55, %53, %cst_52 {dimension_numbers = #tpu.dot_dimension_numbers<[1], [0], [0], [1], [0, 0, 1, 1], [], []>} : vector<8x8xbf16>, vector<8x288xbf16>, vector<8x288xf32> -> vector<8x288xf32>
    %57 = arith.addf %51, %56 : vector<8x288xf32>
    %c0_53 = arith.constant 0 : index
    %c0_54 = arith.constant 0 : index
    %c36 = arith.constant 36 : index
    %58 = vector.load %arg2[%c0_53, %c0_54, %c36] : memref<1x8x384xbf16, #tpu.memory_space<vmem>>, vector<1x8x288xbf16>
    %59 = vector.shape_cast %58 : vector<1x8x288xbf16> to vector<8x288xbf16>
    %c6 = arith.constant 6 : index
    %c0_55 = arith.constant 0 : index
    %c0_56 = arith.constant 0 : index
    %60 = vector.load %arg9[%c6, %c0_55, %c0_56] : memref<9x8x8xbf16, #tpu.memory_space<vmem>>, vector<1x8x8xbf16>
    %61 = vector.shape_cast %60 : vector<1x8x8xbf16> to vector<8x8xbf16>
    %cst_57 = arith.constant dense<0.000000e+00> : vector<8x288xf32>
    %62 = tpu.matmul %61, %59, %cst_57 {dimension_numbers = #tpu.dot_dimension_numbers<[1], [0], [0], [1], [0, 0, 1, 1], [], []>} : vector<8x8xbf16>, vector<8x288xbf16>, vector<8x288xf32> -> vector<8x288xf32>
    %63 = arith.addf %57, %62 : vector<8x288xf32>
    %c0_58 = arith.constant 0 : index
    %c0_59 = arith.constant 0 : index
    %c37 = arith.constant 37 : index
    %64 = vector.load %arg2[%c0_58, %c0_59, %c37] : memref<1x8x384xbf16, #tpu.memory_space<vmem>>, vector<1x8x288xbf16>
    %65 = vector.shape_cast %64 : vector<1x8x288xbf16> to vector<8x288xbf16>
    %c7 = arith.constant 7 : index
    %c0_60 = arith.constant 0 : index
    %c0_61 = arith.constant 0 : index
    %66 = vector.load %arg9[%c7, %c0_60, %c0_61] : memref<9x8x8xbf16, #tpu.memory_space<vmem>>, vector<1x8x8xbf16>
    %67 = vector.shape_cast %66 : vector<1x8x8xbf16> to vector<8x8xbf16>
    %cst_62 = arith.constant dense<0.000000e+00> : vector<8x288xf32>
    %68 = tpu.matmul %67, %65, %cst_62 {dimension_numbers = #tpu.dot_dimension_numbers<[1], [0], [0], [1], [0, 0, 1, 1], [], []>} : vector<8x8xbf16>, vector<8x288xbf16>, vector<8x288xf32> -> vector<8x288xf32>
    %69 = arith.addf %63, %68 : vector<8x288xf32>
    %c0_63 = arith.constant 0 : index
    %c0_64 = arith.constant 0 : index
    %c38 = arith.constant 38 : index
    %70 = vector.load %arg2[%c0_63, %c0_64, %c38] : memref<1x8x384xbf16, #tpu.memory_space<vmem>>, vector<1x8x288xbf16>
    %71 = vector.shape_cast %70 : vector<1x8x288xbf16> to vector<8x288xbf16>
    %c8 = arith.constant 8 : index
    %c0_65 = arith.constant 0 : index
    %c0_66 = arith.constant 0 : index
    %72 = vector.load %arg9[%c8, %c0_65, %c0_66] : memref<9x8x8xbf16, #tpu.memory_space<vmem>>, vector<1x8x8xbf16>
    %73 = vector.shape_cast %72 : vector<1x8x8xbf16> to vector<8x8xbf16>
    %cst_67 = arith.constant dense<0.000000e+00> : vector<8x288xf32>
    %74 = tpu.matmul %73, %71, %cst_67 {dimension_numbers = #tpu.dot_dimension_numbers<[1], [0], [0], [1], [0, 0, 1, 1], [], []>} : vector<8x8xbf16>, vector<8x288xbf16>, vector<8x288xf32> -> vector<8x288xf32>
    %75 = arith.addf %69, %74 : vector<8x288xf32>
    %c0_68 = arith.constant 0 : index
    %c0_69 = arith.constant 0 : index
    %76 = vector.load %arg10[%c0_68, %c0_69] : memref<8x1xf32, #tpu.memory_space<vmem>>, vector<8x1xf32>
    %77 = vector.broadcast %76 : vector<8x1xf32> to vector<8x288xf32>
    %78 = arith.addf %75, %77 : vector<8x288xf32>
    %cst_70 = arith.constant 0.000000e+00 : f32
    %79 = vector.broadcast %cst_70 : f32 to vector<8x288xf32>
    %80 = arith.maximumf %78, %79 : vector<8x288xf32>
    %c0_71 = arith.constant 0 : index
    %c0_72 = arith.constant 0 : index
    %81 = vector.load %arg11[%c0_71, %c0_72] : memref<8x8xf32, #tpu.memory_space<vmem>>, vector<8x8xf32>
    %cst_73 = arith.constant dense<0.000000e+00> : vector<8x288xf32>
    %82 = tpu.matmul %81, %80, %cst_73 {dimension_numbers = #tpu.dot_dimension_numbers<[1], [0], [0], [1], [0, 0, 1, 1], [], []>} : vector<8x8xf32>, vector<8x288xf32>, vector<8x288xf32> -> vector<8x288xf32>
    %c0_74 = arith.constant 0 : index
    %c0_75 = arith.constant 0 : index
    %83 = vector.load %arg12[%c0_74, %c0_75] : memref<8x1xf32, #tpu.memory_space<vmem>>, vector<8x1xf32>
    %84 = vector.broadcast %83 : vector<8x1xf32> to vector<8x288xf32>
    %85 = arith.addf %82, %84 : vector<8x288xf32>
    %86 = vector.broadcast %20 : vector<8x1xf32> to vector<8x288xf32>
    %87 = arith.mulf %85, %86 : vector<8x288xf32>
    %c0_76 = arith.constant 0 : index
    %c0_77 = arith.constant 0 : index
    %c0_78 = arith.constant 0 : index
    %88 = vector.load %arg13[%c0_76, %c0_77, %c0_78] : memref<1x8x288xf32, #tpu.memory_space<vmem>>, vector<1x8x288xf32>
    %89 = vector.shape_cast %88 : vector<1x8x288xf32> to vector<8x288xf32>
    %90 = vector.shape_cast %87 : vector<8x288xf32> to vector<1x8x288xf32>
    tpu.vector_store %arg13[%c0_76, %c0_77, %c0_78], %90 {strides = array<i32>} : memref<1x8x288xf32, #tpu.memory_space<vmem>>, vector<1x8x288xf32>,
    return
  }
  func.func @transform_0(%arg0: i32) -> (i32, i32, i32) {
    %c0_i32 = arith.constant 0 : i32
    %c0_i32_0 = arith.constant 0 : i32
    %c0_i32_1 = arith.constant 0 : i32
    return %arg0, %c0_i32, %c0_i32_0 : i32, i32, i32
  }
  func.func @transform_1(%arg0: i32) -> (i32, i32, i32) {
    %c0_i32 = arith.constant 0 : i32
    %c0_i32_0 = arith.constant 0 : i32
    %c0_i32_1 = arith.constant 0 : i32
    return %arg0, %c0_i32, %c0_i32_0 : i32, i32, i32
  }
  func.func @transform_2(%arg0: i32) -> (i32, i32) {
    %c0_i32 = arith.constant 0 : i32
    %c0_i32_0 = arith.constant 0 : i32
    %c0_i32_1 = arith.constant 0 : i32
    return %c0_i32, %c0_i32_0 : i32, i32
  }
  func.func @transform_3(%arg0: i32) -> (i32, i32) {
    %c0_i32 = arith.constant 0 : i32
    %c0_i32_0 = arith.constant 0 : i32
    %c0_i32_1 = arith.constant 0 : i32
    return %c0_i32, %c0_i32_0 : i32, i32
  }
  func.func @transform_4(%arg0: i32) -> (i32, i32) {
    %c0_i32 = arith.constant 0 : i32
    %c0_i32_0 = arith.constant 0 : i32
    %c0_i32_1 = arith.constant 0 : i32
    return %c0_i32, %c0_i32_0 : i32, i32
  }
  func.func @transform_5(%arg0: i32) -> (i32, i32) {
    %c0_i32 = arith.constant 0 : i32
    %c0_i32_0 = arith.constant 0 : i32
    %c0_i32_1 = arith.constant 0 : i32
    return %c0_i32, %c0_i32_0 : i32, i32
  }
  func.func @transform_6(%arg0: i32) -> (i32, i32) {
    %c0_i32 = arith.constant 0 : i32
    %c0_i32_0 = arith.constant 0 : i32
    %c0_i32_1 = arith.constant 0 : i32
    return %c0_i32, %c0_i32_0 : i32, i32
  }
  func.func @transform_7(%arg0: i32) -> (i32, i32) {
    %c0_i32 = arith.constant 0 : i32
    %c0_i32_0 = arith.constant 0 : i32
    %c0_i32_1 = arith.constant 0 : i32
    return %c0_i32, %c0_i32_0 : i32, i32
  }
  func.func @transform_8(%arg0: i32) -> (i32, i32, i32) {
    %c0_i32 = arith.constant 0 : i32
    %c0_i32_0 = arith.constant 0 : i32
    %c0_i32_1 = arith.constant 0 : i32
    %c0_i32_2 = arith.constant 0 : i32
    return %c0_i32, %c0_i32_0, %c0_i32_1 : i32, i32, i32
  }
  func.func @transform_9(%arg0: i32) -> (i32, i32) {
    %c0_i32 = arith.constant 0 : i32
    %c0_i32_0 = arith.constant 0 : i32
    %c0_i32_1 = arith.constant 0 : i32
    return %c0_i32, %c0_i32_0 : i32, i32
  }
  func.func @transform_10(%arg0: i32) -> (i32, i32) {
    %c0_i32 = arith.constant 0 : i32
    %c0_i32_0 = arith.constant 0 : i32
    %c0_i32_1 = arith.constant 0 : i32
    return %c0_i32, %c0_i32_0 : i32, i32
  }
  func.func @transform_11(%arg0: i32) -> (i32, i32) {
    %c0_i32 = arith.constant 0 : i32
    %c0_i32_0 = arith.constant 0 : i32
    %c0_i32_1 = arith.constant 0 : i32
    return %c0_i32, %c0_i32_0 : i32, i32
  }
  func.func @transform_12(%arg0: i32) -> (i32, i32, i32) {
    %c0_i32 = arith.constant 0 : i32
    %c0_i32_0 = arith.constant 0 : i32
    %c0_i32_1 = arith.constant 0 : i32
    return %arg0, %c0_i32, %c0_i32_0 : i32, i32, i32
  }
}

</mosaic_0001>

<llo_original>
// kernel: sspa_forward.1
$region0: #{sspa_forward.1}
  #allocation0 [shape = 'u32[]', space=smem, size = 0x4, offset = 0x4, fixed_abs, tag = 'smem constant byte address 0x4 - core index']
  #allocation1 [shape = 'u32[72,128]{1,0:T(1,128)}', space=vmem, size = 0x9000, scoped, tag = 'internal scratch']
  %s0 = inlined_call_operand.vmem [shape: f32[2,128,1], index: 0, kind: input, shape index: {}]
  %s1 = inlined_call_operand.vmem [shape: bf16[2,8,384], index: 1, kind: input, shape index: {}]
  %s2 = inlined_call_operand.vmem [shape: f32[8,128], index: 2, kind: input, shape index: {}]
  %s3 = inlined_call_operand.vmem [shape: f32[8,1], index: 3, kind: input, shape index: {}]
  %s4 = inlined_call_operand.vmem [shape: f32[8,8], index: 4, kind: input, shape index: {}]
  %s5 = inlined_call_operand.vmem [shape: f32[8,1], index: 5, kind: input, shape index: {}]
  %s6 = inlined_call_operand.vmem [shape: f32[8,8], index: 6, kind: input, shape index: {}]
  %s7 = inlined_call_operand.vmem [shape: f32[8,1], index: 7, kind: input, shape index: {}]
  %s8 = inlined_call_operand.vmem [shape: bf16[9,8,8], index: 8, kind: input, shape index: {}]
  %s9 = inlined_call_operand.vmem [shape: f32[8,1], index: 9, kind: input, shape index: {}]
  %s10 = inlined_call_operand.vmem [shape: f32[8,8], index: 10, kind: input, shape index: {}]
  %s11 = inlined_call_operand.vmem [shape: f32[8,1], index: 11, kind: input, shape index: {}]
  %s12 = inlined_call_operand.vmem [shape: f32[2,8,288], index: 12, kind: output, shape index: {}]
  %s13 = sld [smem:[#allocation0]]
  $region81: #{sspa_forward.1} parent=0
    _
  %s15 = ssub.s32 1, %s13
  %s16 = scalar_select 0, %s15, %s13
  loop: start=0, step=1, limit=4
  $region2: #{sspa_forward.1} parent=0 // loop_pre_header
    _
  $region3: #{sspa_forward.1} parent=0 // loop_header
    %s18 = sphi 0, %s22
    %p19 = scmp.ge.s32.totalorder %s18, 4
    %s28 = sphi 0, %s30
    %s31 = sphi 0, %s28
    %s32 = sphi 0, %s31
    %s48 = sphi 0, %s32
    %s54 = sphi 0, %s56
    %s57 = sphi 0, %s54
    %s58 = sphi 0, %s57
    %s74 = sphi 0, %s58
    %s78 = sphi 0, %s78
    %s80 = sphi 0, %s78
    %s81 = sphi 0, %s80
    %s95 = sphi 0, %s81
    %s99 = sphi 0, %s99
    %s101 = sphi 0, %s99
    %s102 = sphi 0, %s101
    %s116 = sphi 0, %s102
    %s120 = sphi 0, %s120
    %s122 = sphi 0, %s120
    %s123 = sphi 0, %s122
    %s137 = sphi 0, %s123
    %s141 = sphi 0, %s141
    %s143 = sphi 0, %s141
    %s144 = sphi 0, %s143
    %s158 = sphi 0, %s144
    %s162 = sphi 0, %s162
    %s164 = sphi 0, %s162
    %s165 = sphi 0, %s164
    %s179 = sphi 0, %s165
    %s183 = sphi 0, %s183
    %s185 = sphi 0, %s183
    %s186 = sphi 0, %s185
    %s200 = sphi 0, %s186
    %s204 = sphi 0, %s204
    %s206 = sphi 0, %s204
    %s207 = sphi 0, %s206
    %s221 = sphi 0, %s207
    %s225 = sphi 0, %s225
    %s227 = sphi 0, %s225
    %s228 = sphi 0, %s227
    %s242 = sphi 0, %s228
    %s246 = sphi 0, %s246
    %s248 = sphi 0, %s246
    %s249 = sphi 0, %s248
    %s263 = sphi 0, %s249
    %s267 = sphi 0, %s267
    %s269 = sphi 0, %s267
    %s270 = sphi 0, %s269
    %s284 = sphi 0, %s270
    %s290 = sphi 0, %s292
    %s293 = sphi 0, %s290
    %s294 = sphi 0, %s293
    %s310 = sphi 0, %s294
  $region4: #{sspa_forward.1} parent=0 // loop_header_branch
    %21 = sbr.rel (%p19) target = $region8
  $region5: #{sspa_forward.1} parent=0 // loop_body
    %s23 = ssub.s32 %s18, 1
    %s24 = ssub.s32 %s18, 2
    %s25 = sadd.s32 %s18, 1
    %s26 = ssub.s32 %s18, %s25
    %p27 = scmp.eq.s32.totalorder %s26, 0
    %s29 = sadd.s32 %s28, 1
    %s30 = scalar_select %p27, %s28, %s29
    %p33 = pneg %p27
    %p34 = scmp.eq.s32.totalorder %s18, 1
    %p35 = por %p33, %p34
    %p36 = scmp.ne.s32.totalorder %s28, %s31
    %p37 = scmp.eq.s32.totalorder %s18, 0
    %p38 = por %p36, %p37
    %p39 = scmp.ne.s32.totalorder %s28, %s31
    %p40 = scmp.eq.s32.totalorder %s23, 1
    %p41 = por %p39, %p40
    %p42 = scmp.ne.s32.totalorder %s31, %s32
    %p43 = scmp.eq.s32.totalorder %s23, 0
    %p44 = por %p42, %p43
    %p45 = scmp.ne.s32.totalorder %s31, %s32
    %p46 = scmp.eq.s32.totalorder %s24, 1
    %p47 = por %p45, %p46
    %p49 = scmp.ne.s32.totalorder %s32, %s48
    %p50 = scmp.eq.s32.totalorder %s24, 0
    %p51 = por %p49, %p50
    %s52 = ssub.s32 %s18, %s25
    %p53 = scmp.eq.s32.totalorder %s52, 0
    %s55 = sadd.s32 %s54, 1
    %s56 = scalar_select %p53, %s54, %s55
    %p59 = pneg %p53
    %p60 = scmp.eq.s32.totalorder %s18, 1
    %p61 = por %p59, %p60
    %p62 = scmp.ne.s32.totalorder %s54, %s57
    %p63 = scmp.eq.s32.totalorder %s18, 0
    %p64 = por %p62, %p63
    %p65 = scmp.ne.s32.totalorder %s54, %s57
    %p66 = scmp.eq.s32.totalorder %s23, 1
    %p67 = por %p65, %p66
    %p68 = scmp.ne.s32.totalorder %s57, %s58
    %p69 = scmp.eq.s32.totalorder %s23, 0
    %p70 = por %p68, %p69
    %p71 = scmp.ne.s32.totalorder %s57, %s58
    %p72 = scmp.eq.s32.totalorder %s24, 1
    %p73 = por %p71, %p72
    %p75 = scmp.ne.s32.totalorder %s58, %s74
    %p76 = scmp.eq.s32.totalorder %s24, 0
    %p77 = por %p75, %p76
    %s79 = sadd.s32 %s78, 1
    %p82 = scmp.eq.s32.totalorder %s18, 1
    %p83 = scmp.ne.s32.totalorder %s78, %s80
    %p84 = scmp.eq.s32.totalorder %s18, 0
    %p85 = por %p83, %p84
    %p86 = scmp.ne.s32.totalorder %s78, %s80
    %p87 = scmp.eq.s32.totalorder %s23, 1
    %p88 = por %p86, %p87
    %p89 = scmp.ne.s32.totalorder %s80, %s81
    %p90 = scmp.eq.s32.totalorder %s23, 0
    %p91 = por %p89, %p90
    %p92 = scmp.ne.s32.totalorder %s80, %s81
    %p93 = scmp.eq.s32.totalorder %s24, 1
    %p94 = por %p92, %p93
    %p96 = scmp.ne.s32.totalorder %s81, %s95
    %p97 = scmp.eq.s32.totalorder %s24, 0
    %p98 = por %p96, %p97
    %s100 = sadd.s32 %s99, 1
    %p103 = scmp.eq.s32.totalorder %s18, 1
    %p104 = scmp.ne.s32.totalorder %s99, %s101
    %p105 = scmp.eq.s32.totalorder %s18, 0
    %p106 = por %p104, %p105
    %p107 = scmp.ne.s32.totalorder %s99, %s101
    %p108 = scmp.eq.s32.totalorder %s23, 1
    %p109 = por %p107, %p108
    %p110 = scmp.ne.s32.totalorder %s101, %s102
    %p111 = scmp.eq.s32.totalorder %s23, 0
    %p112 = por %p110, %p111
    %p113 = scmp.ne.s32.totalorder %s101, %s102
    %p114 = scmp.eq.s32.totalorder %s24, 1
    %p115 = por %p113, %p114
    %p117 = scmp.ne.s32.totalorder %s102, %s116
    %p118 = scmp.eq.s32.totalorder %s24, 0
    %p119 = por %p117, %p118
    %s121 = sadd.s32 %s120, 1
    %p124 = scmp.eq.s32.totalorder %s18, 1
    %p125 = scmp.ne.s32.totalorder %s120, %s122
    %p126 = scmp.eq.s32.totalorder %s18, 0
    %p127 = por %p125, %p126
    %p128 = scmp.ne.s32.totalorder %s120, %s122
    %p129 = scmp.eq.s32.totalorder %s23, 1
    %p130 = por %p128, %p129
    %p131 = scmp.ne.s32.totalorder %s122, %s123
    %p132 = scmp.eq.s32.totalorder %s23, 0
    %p133 = por %p131, %p132
    %p134 = scmp.ne.s32.totalorder %s122, %s123
    %p135 = scmp.eq.s32.totalorder %s24, 1
    %p136 = por %p134, %p135
    %p138 = scmp.ne.s32.totalorder %s123, %s137
    %p139 = scmp.eq.s32.totalorder %s24, 0
    %p140 = por %p138, %p139
    %s142 = sadd.s32 %s141, 1
    %p145 = scmp.eq.s32.totalorder %s18, 1
    %p146 = scmp.ne.s32.totalorder %s141, %s143
    %p147 = scmp.eq.s32.totalorder %s18, 0
    %p148 = por %p146, %p147
    %p149 = scmp.ne.s32.totalorder %s141, %s143
    %p150 = scmp.eq.s32.totalorder %s23, 1
    %p151 = por %p149, %p150
    %p152 = scmp.ne.s32.totalorder %s143, %s144
    %p153 = scmp.eq.s32.totalorder %s23, 0
    %p154 = por %p152, %p153
    %p155 = scmp.ne.s32.totalorder %s143, %s144
    %p156 = scmp.eq.s32.totalorder %s24, 1
    %p157 = por %p155, %p156
    %p159 = scmp.ne.s32.totalorder %s144, %s158
    %p160 = scmp.eq.s32.totalorder %s24, 0
    %p161 = por %p159, %p160
    %s163 = sadd.s32 %s162, 1
    %p166 = scmp.eq.s32.totalorder %s18, 1
    %p167 = scmp.ne.s32.totalorder %s162, %s164
    %p168 = scmp.eq.s32.totalorder %s18, 0
    %p169 = por %p167, %p168
    %p170 = scmp.ne.s32.totalorder %s162, %s164
    %p171 = scmp.eq.s32.totalorder %s23, 1
    %p172 = por %p170, %p171
    %p173 = scmp.ne.s32.totalorder %s164, %s165
    %p174 = scmp.eq.s32.totalorder %s23, 0
    %p175 = por %p173, %p174
    %p176 = scmp.ne.s32.totalorder %s164, %s165
    %p177 = scmp.eq.s32.totalorder %s24, 1
    %p178 = por %p176, %p177
    %p180 = scmp.ne.s32.totalorder %s165, %s179
    %p181 = scmp.eq.s32.totalorder %s24, 0
    %p182 = por %p180, %p181
    %s184 = sadd.s32 %s183, 1
    %p187 = scmp.eq.s32.totalorder %s18, 1
    %p188 = scmp.ne.s32.totalorder %s183, %s185
    %p189 = scmp.eq.s32.totalorder %s18, 0
    %p190 = por %p188, %p189
    %p191 = scmp.ne.s32.totalorder %s183, %s185
    %p192 = scmp.eq.s32.totalorder %s23, 1
    %p193 = por %p191, %p192
    %p194 = scmp.ne.s32.totalorder %s185, %s186
    %p195 = scmp.eq.s32.totalorder %s23, 0
    %p196 = por %p194, %p195
    %p197 = scmp.ne.s32.totalorder %s185, %s186
    %p198 = scmp.eq.s32.totalorder %s24, 1
    %p199 = por %p197, %p198
    %p201 = scmp.ne.s32.totalorder %s186, %s200
    %p202 = scmp.eq.s32.totalorder %s24, 0
    %p203 = por %p201, %p202
    %s205 = sadd.s32 %s204, 1
    %p208 = scmp.eq.s32.totalorder %s18, 1
    %p209 = scmp.ne.s32.totalorder %s204, %s206
    %p210 = scmp.eq.s32.totalorder %s18, 0
    %p211 = por %p209, %p210
    %p212 = scmp.ne.s32.totalorder %s204, %s206
    %p213 = scmp.eq.s32.totalorder %s23, 1
    %p214 = por %p212, %p213
    %p215 = scmp.ne.s32.totalorder %s206, %s207
    %p216 = scmp.eq.s32.totalorder %s23, 0
    %p217 = por %p215, %p216
    %p218 = scmp.ne.s32.totalorder %s206, %s207
    %p219 = scmp.eq.s32.totalorder %s24, 1
    %p220 = por %p218, %p219
    %p222 = scmp.ne.s32.totalorder %s207, %s221
    %p223 = scmp.eq.s32.totalorder %s24, 0
    %p224 = por %p222, %p223
    %s226 = sadd.s32 %s225, 1
    %p229 = scmp.eq.s32.totalorder %s18, 1
    %p230 = scmp.ne.s32.totalorder %s225, %s227
    %p231 = scmp.eq.s32.totalorder %s18, 0
    %p232 = por %p230, %p231
    %p233 = scmp.ne.s32.totalorder %s225, %s227
    %p234 = scmp.eq.s32.totalorder %s23, 1
    %p235 = por %p233, %p234
    %p236 = scmp.ne.s32.totalorder %s227, %s228
    %p237 = scmp.eq.s32.totalorder %s23, 0
    %p238 = por %p236, %p237
    %p239 = scmp.ne.s32.totalorder %s227, %s228
    %p240 = scmp.eq.s32.totalorder %s24, 1
    %p241 = por %p239, %p240
    %p243 = scmp.ne.s32.totalorder %s228, %s242
    %p244 = scmp.eq.s32.totalorder %s24, 0
    %p245 = por %p243, %p244
    %s247 = sadd.s32 %s246, 1
    %p250 = scmp.eq.s32.totalorder %s18, 1
    %p251 = scmp.ne.s32.totalorder %s246, %s248
    %p252 = scmp.eq.s32.totalorder %s18, 0
    %p253 = por %p251, %p252
    %p254 = scmp.ne.s32.totalorder %s246, %s248
    %p255 = scmp.eq.s32.totalorder %s23, 1
    %p256 = por %p254, %p255
    %p257 = scmp.ne.s32.totalorder %s248, %s249
    %p258 = scmp.eq.s32.totalorder %s23, 0
    %p259 = por %p257, %p258
    %p260 = scmp.ne.s32.totalorder %s248, %s249
    %p261 = scmp.eq.s32.totalorder %s24, 1
    %p262 = por %p260, %p261
    %p264 = scmp.ne.s32.totalorder %s249, %s263
    %p265 = scmp.eq.s32.totalorder %s24, 0
    %p266 = por %p264, %p265
    %s268 = sadd.s32 %s267, 1
    %p271 = scmp.eq.s32.totalorder %s18, 1
    %p272 = scmp.ne.s32.totalorder %s267, %s269
    %p273 = scmp.eq.s32.totalorder %s18, 0
    %p274 = por %p272, %p273
    %p275 = scmp.ne.s32.totalorder %s267, %s269
    %p276 = scmp.eq.s32.totalorder %s23, 1
    %p277 = por %p275, %p276
    %p278 = scmp.ne.s32.totalorder %s269, %s270
    %p279 = scmp.eq.s32.totalorder %s23, 0
    %p280 = por %p278, %p279
    %p281 = scmp.ne.s32.totalorder %s269, %s270
    %p282 = scmp.eq.s32.totalorder %s24, 1
    %p283 = por %p281, %p282
    %p285 = scmp.ne.s32.totalorder %s270, %s284
    %p286 = scmp.eq.s32.totalorder %s24, 0
    %p287 = por %p285, %p286
    %s288 = ssub.s32 %s18, %s25
    %p289 = scmp.eq.s32.totalorder %s288, 0
    %s291 = sadd.s32 %s290, 1
    %s292 = scalar_select %p289, %s290, %s291
    %p295 = pneg %p289
    %p296 = scmp.eq.s32.totalorder %s18, 1
    %p297 = por %p295, %p296
    %p298 = scmp.ne.s32.totalorder %s290, %s293
    %p299 = scmp.eq.s32.totalorder %s18, 0
    %p300 = por %p298, %p299
    %p301 = scmp.ne.s32.totalorder %s290, %s293
    %p302 = scmp.eq.s32.totalorder %s23, 1
    %p303 = por %p301, %p302
    %p304 = scmp.ne.s32.totalorder %s293, %s294
    %p305 = scmp.eq.s32.totalorder %s23, 0
    %p306 = por %p304, %p305
    %p307 = scmp.ne.s32.totalorder %s293, %s294
    %p308 = scmp.eq.s32.totalorder %s24, 1
    %p309 = por %p307, %p308
    %p311 = scmp.ne.s32.totalorder %s294, %s310
    %p312 = scmp.eq.s32.totalorder %s24, 0
    %p313 = por %p311, %p312
    %p314 = scmp.le.s32.totalorder 1, %s18
    %p315 = scmp.lt.s32.totalorder %s18, 3
    %p316 = pnand %p314, %p315
    %p317 = pneg %p316
    // Predicated region
    $region9: #{sspa_forward.1} parent=5 // pred_check
      _
    $region10: #{sspa_forward.1} parent=5 // pred_check_branch
      %319 = sbr.rel (%p316) target = $region12
    $region11: #{sspa_forward.1} parent=5 // pred_region
      %s320 = ssub.s32 %s18, 1
      // Predicated region
      $region13: #{sspa_forward.1} parent=11 // pred_check
        %p321 = pneg %p91
      $region14: #{sspa_forward.1} parent=11 // pred_check_branch
        %323 = sbr.rel (%p321) target = $region16
      $region15: #{sspa_forward.1} parent=11 // pred_region
        _
      $region16: #{sspa_forward.1} parent=11 // pred_fallthru
        _
      // Predicated region
      $region17: #{sspa_forward.1} parent=11 // pred_check
        %p324 = pneg %p112
      $region18: #{sspa_forward.1} parent=11 // pred_check_branch
        %326 = sbr.rel (%p324) target = $region20
      $region19: #{sspa_forward.1} parent=11 // pred_region
        _
      $region20: #{sspa_forward.1} parent=11 // pred_fallthru
        _
      // Predicated region
      $region21: #{sspa_forward.1} parent=11 // pred_check
        %p327 = pneg %p133
      $region22: #{sspa_forward.1} parent=11 // pred_check_branch
        %329 = sbr.rel (%p327) target = $region24
      $region23: #{sspa_forward.1} parent=11 // pred_region
        _
      $region24: #{sspa_forward.1} parent=11 // pred_fallthru
        _
      // Predicated region
      $region25: #{sspa_forward.1} parent=11 // pred_check
        %p330 = pneg %p154
      $region26: #{sspa_forward.1} parent=11 // pred_check_branch
        %332 = sbr.rel (%p330) target = $region28
      $region27: #{sspa_forward.1} parent=11 // pred_region
        _
      $region28: #{sspa_forward.1} parent=11 // pred_fallthru
        _
      // Predicated region
      $region29: #{sspa_forward.1} parent=11 // pred_check
        %p333 = pneg %p175
      $region30: #{sspa_forward.1} parent=11 // pred_check_branch
        %335 = sbr.rel (%p333) target = $region32
      $region31: #{sspa_forward.1} parent=11 // pred_region
        _
      $region32: #{sspa_forward.1} parent=11 // pred_fallthru
        _
      // Predicated region
      $region33: #{sspa_forward.1} parent=11 // pred_check
        %p336 = pneg %p196
      $region34: #{sspa_forward.1} parent=11 // pred_check_branch
        %338 = sbr.rel (%p336) target = $region36
      $region35: #{sspa_forward.1} parent=11 // pred_region
        _
      $region36: #{sspa_forward.1} parent=11 // pred_fallthru
        _
      // Predicated region
      $region37: #{sspa_forward.1} parent=11 // pred_check
        %p339 = pneg %p217
      $region38: #{sspa_forward.1} parent=11 // pred_check_branch
        %341 = sbr.rel (%p339) target = $region40
      $region39: #{sspa_forward.1} parent=11 // pred_region
        _
      $region40: #{sspa_forward.1} parent=11 // pred_fallthru
        _
      // Predicated region
      $region41: #{sspa_forward.1} parent=11 // pred_check
        %p342 = pneg %p238
      $region42: #{sspa_forward.1} parent=11 // pred_check_branch
        %344 = sbr.rel (%p342) target = $region44
      $region43: #{sspa_forward.1} parent=11 // pred_region
        _
      $region44: #{sspa_forward.1} parent=11 // pred_fallthru
        _
      // Predicated region
      $region45: #{sspa_forward.1} parent=11 // pred_check
        %p345 = pneg %p259
      $region46: #{sspa_forward.1} parent=11 // pred_check_branch
        %347 = sbr.rel (%p345) target = $region48
      $region47: #{sspa_forward.1} parent=11 // pred_region
        _
      $region48: #{sspa_forward.1} parent=11 // pred_fallthru
        _
      // Predicated region
      $region49: #{sspa_forward.1} parent=11 // pred_check
        %p348 = pneg %p280
      $region50: #{sspa_forward.1} parent=11 // pred_check_branch
        %350 = sbr.rel (%p348) target = $region52
      $region51: #{sspa_forward.1} parent=11 // pred_region
        _
      $region52: #{sspa_forward.1} parent=11 // pred_fallthru
        _
    $region12: #{sspa_forward.1} parent=5 // pred_fallthru
      _
    %p351 = scmp.lt.s32.totalorder %s18, 2
    // Predicated region
    $region53: #{sspa_forward.1} parent=5 // pred_check
      %p352 = pneg %p351
    $region54: #{sspa_forward.1} parent=5 // pred_check_branch
      %354 = sbr.rel (%p352) target = $region56
    $region55: #{sspa_forward.1} parent=5 // pred_region
      // Predicated region
      $region57: #{sspa_forward.1} parent=55 // pred_check
        %p355 = pneg %p38
      $region58: #{sspa_forward.1} parent=55 // pred_check_branch
        %357 = sbr.rel (%p355) target = $region60
      $region59: #{sspa_forward.1} parent=55 // pred_region
        %p358 = scmp.lt.s32.totalorder %s18, 1
        %s359 = scalar_select %p358, %s18, 1
        %s360 = smul.addr %s359, 16
        %s361 = smul.addr %s360, 8
        %s362 = scalar_lea.vmem %s0, %s361
      $region60: #{sspa_forward.1} parent=55 // pred_fallthru
        _
      // Predicated region
      $region61: #{sspa_forward.1} parent=55 // pred_check
        %p363 = pneg %p64
      $region62: #{sspa_forward.1} parent=55 // pred_check_branch
        %365 = sbr.rel (%p363) target = $region64
      $region63: #{sspa_forward.1} parent=55 // pred_region
        %p366 = scmp.lt.s32.totalorder %s18, 1
        %s367 = scalar_select %p366, %s18, 1
        %s368 = smul.addr %s367, 3
        %s369 = smul.addr %s368, 4
        %s370 = scalar_lea.vmem %s1, %s369
      $region64: #{sspa_forward.1} parent=55 // pred_fallthru
        _
    $region56: #{sspa_forward.1} parent=5 // pred_fallthru
      _
    %p371 = scmp.le.s32.totalorder 1, %s18
    %p372 = scmp.lt.s32.totalorder %s18, 3
    %p373 = pnand %p371, %p372
    %p374 = pneg %p373
    // Predicated region
    $region65: #{sspa_forward.1} parent=5 // pred_check
      _
    $region66: #{sspa_forward.1} parent=5 // pred_check_branch
      %376 = sbr.rel (%p373) target = $region68
    $region67: #{sspa_forward.1} parent=5 // pred_region
      %s377 = ssub.s32 %s18, 1
      %p378 = scmp.lt.s32.totalorder %s23, 1
      %s379 = scalar_select %p378, %s23, 1
      %s380 = smul.addr %s379, 16
      %s381 = smul.addr %s380, 8
      %s382 = scalar_lea.vmem %s0, %s381
      %p383 = pneg %p44
      %p384 = pneg %p41
      %p385 = scmp.lt.s32.totalorder %s23, 1
      %s386 = scalar_select %p385, %s23, 1
      %s387 = smul.addr %s386, 3
      %s388 = smul.addr %s387, 4
      %s389 = scalar_lea.vmem %s1, %s388
      %p390 = pneg %p70
      %p391 = pneg %p67
      %p392 = pneg %p91
      %p393 = pneg %p88
      %p394 = pneg %p112
      %p395 = pneg %p109
      %p396 = pneg %p133
      %p397 = pneg %p130
      %p398 = pneg %p154
      %p399 = pneg %p151
      %p400 = pneg %p175
      %p401 = pneg %p172
      %p402 = pneg %p196
      %p403 = pneg %p193
      %p404 = pneg %p217
      %p405 = pneg %p214
      %p406 = pneg %p238
      %p407 = pneg %p235
      %p408 = pneg %p259
      %p409 = pneg %p256
      %p410 = pneg %p280
      %p411 = pneg %p277
      %p412 = pneg %p306
      %p413 = pneg %p303
      %p414 = scmp.lt.s32.totalorder %s23, 1
      %s415 = scalar_select %p414, %s23, 1
      %s416 = smul.addr %s415, 3
      %s417 = smul.addr %s416, 8
      %s418 = scalar_lea.vmem %s12, %s417
      %p419 = scmp.lt.s32.totalorder %s23, 1
      %s420 = scalar_select %p419, %s23, 1
      %s421 = smul.addr %s420, 16
      %s422 = smul.addr %s421, 8
      %s423 = scalar_lea.vmem %s0, %s422
      %p424 = scmp.lt.s32.totalorder %s23, 1
      %s425 = scalar_select %p424, %s23, 1
      %s426 = smul.addr %s425, 3
      %s427 = smul.addr %s426, 4
      %s428 = scalar_lea.vmem %s1, %s427
      %p429 = scmp.lt.s32.totalorder %s23, 1
      %s430 = scalar_select %p429, %s23, 1
      %s431 = smul.addr %s430, 3
      %s432 = smul.addr %s431, 8
      %s433 = scalar_lea.vmem %s12, %s432
      %v435 = vld [vmem:[%s423] sm:$0xff]
      %v436 = vld [vmem:[%s423 + $0x8] sm:$0xff]
      %v437 = vld [vmem:[%s423 + $0x10] sm:$0xff]
      %v438 = vld [vmem:[%s423 + $0x18] sm:$0xff]
      %v439 = vld [vmem:[%s423 + $0x20] sm:$0xff]
      %v440 = vld [vmem:[%s423 + $0x28] sm:$0xff]
      %v441 = vld [vmem:[%s423 + $0x30] sm:$0xff]
      %v442 = vld [vmem:[%s423 + $0x38] sm:$0xff]
      %v443 = vld [vmem:[%s423 + $0x40] sm:$0xff]
      %v444 = vld [vmem:[%s423 + $0x48] sm:$0xff]
      %v445 = vld [vmem:[%s423 + $0x50] sm:$0xff]
      %v446 = vld [vmem:[%s423 + $0x58] sm:$0xff]
      %v447 = vld [vmem:[%s423 + $0x60] sm:$0xff]
      %v448 = vld [vmem:[%s423 + $0x68] sm:$0xff]
      %v449 = vld [vmem:[%s423 + $0x70] sm:$0xff]
      %v450 = vld [vmem:[%s423 + $0x78] sm:$0xff]
      %v451 = vld [vmem:[%s2] sm:$0xff]
      %v452 = vld [vmem:[%s3] sm:$0xff]
      %453 = vmatpush.msra.mxu0 %v450
      %454 = vmatpush.msra.mxu0 %v449
      %455 = vmatpush.msra.mxu0 %v448
      %456 = vmatpush.msra.mxu0 %v447
      %457 = vmatpush.msra.mxu0 %v446
      %458 = vmatpush.msra.mxu0 %v445
      %459 = vmatpush.msra.mxu0 %v444
      %460 = vmatpush.msra.mxu0 %v443
      %461 = vmatpush.msra.mxu0 %v442
      %462 = vmatpush.msra.mxu0 %v441
      %463 = vmatpush.msra.mxu0 %v440
      %464 = vmatpush.msra.mxu0 %v439
      %465 = vmatpush.msra.mxu0 %v438
      %466 = vmatpush.msra.mxu0 %v437
      %467 = vmatpush.msra.mxu0 %v436
      %468 = vmatpush.msra.mxu0 %v435
      %469 = vmatmul.f32.gmra.mxu0 %v451
      %v470 = vpop.f32.mrf.mxu0
      %v471 = vadd.f32 %v452, %v470
      %472 = vdwg.mxu0
      %v473 = vld [vmem:[%s4] sm:$0xff]
      %v474 = vld [vmem:[%s5] sm:$0xff]
      %vm475 = vcmask 64512
      %v477 = vsel %vm475, %v473, 0
      %479 = vmatpush.msra.mxu0 0.0
      %480 = vmatpush.msra.mxu0 0.0
      %481 = vmatpush.msra.mxu0 0.0
      %482 = vmatpush.msra.mxu0 0.0
      %483 = vmatpush.msra.mxu0 0.0
      %484 = vmatpush.msra.mxu0 0.0
      %485 = vmatpush.msra.mxu0 0.0
      %486 = vmatpush.msra.mxu0 0.0
      %487 = vmatpush.msra.mxu0 0.0
      %488 = vmatpush.msra.mxu0 0.0
      %489 = vmatpush.msra.mxu0 0.0
      %490 = vmatpush.msra.mxu0 0.0
      %491 = vmatpush.msra.mxu0 0.0
      %492 = vmatpush.msra.mxu0 0.0
      %493 = vmatpush.msra.mxu0 0.0
      %494 = vmatpush.msra.mxu0 %v471
      %495 = vmatmul.f32.gmra.mxu0 %v477
      %v496 = vpop.f32.mrf.mxu0
      %v497 = vadd.f32 %v474, %v496
      %498 = vdwg.mxu0
      %v499 = vmax.f32 %v497, 0.0
      %v500 = vld [vmem:[%s6] sm:$0xff]
      %v501 = vld [vmem:[%s7] sm:$0xff]
      %v503 = vsel %vm475, %v500, 0
      %505 = vmatpush.msra.mxu0 0.0
      %506 = vmatpush.msra.mxu0 0.0
      %507 = vmatpush.msra.mxu0 0.0
      %508 = vmatpush.msra.mxu0 0.0
      %509 = vmatpush.msra.mxu0 0.0
      %510 = vmatpush.msra.mxu0 0.0
      %511 = vmatpush.msra.mxu0 0.0
      %512 = vmatpush.msra.mxu0 0.0
      %513 = vmatpush.msra.mxu0 0.0
      %514 = vmatpush.msra.mxu0 0.0
      %515 = vmatpush.msra.mxu0 0.0
      %516 = vmatpush.msra.mxu0 0.0
      %517 = vmatpush.msra.mxu0 0.0
      %518 = vmatpush.msra.mxu0 0.0
      %519 = vmatpush.msra.mxu0 0.0
      %520 = vmatpush.msra.mxu0 %v499
      %521 = vmatmul.f32.gmra.mxu0 %v503
      %v522 = vpop.f32.mrf.mxu0
      %v523 = vadd.f32 %v501, %v522
      %524 = vdwg.mxu0
      %v525 = vxor.u32 %v523, 2147483648
      %v526 = vmul.f32 %v525, 1.442695
      %v527 = vpow.pop %v526
      %v528 = vadd.f32 %v527, 1.0
      %v529 = vrcp.pop %v528
      %v530 = vmul.f32 %v528, %v529
      %v531 = vsub.f32 1.0, %v530
      %v532 = vmul.f32 %v529, %v531
      %v533 = vadd.f32 %v529, %v532
      %vm534 = vweird.f32 %v528
      %vm535 = vweird.f32 %v529
      %vm536 = vmor %vm534, %vm535
      %v537 = vsel %vm536, %v529, %v533
      %v538 = vand.u32 2147483647, %v528
      %vm539 = vcmp.eq.f32.partialorder %v538, 8.507059e+37
      %v540 = vand.u32 %v528, 2147483648
      %v541 = vor.u32 1.1754944e-38, %v540
      %v542 = vsel %vm539, %v541, %v537
      %v543 = vmul.f32 1.0, %v542
      %v544 = vld [vmem:[%s428] sm:$0xff]
      %v545 = vld [vmem:[%s428 + $0x8] sm:$0xf]
      %v546 = vld [vmem:[%s8] sm:$0xf]
      %s547 = scalar_lea.vmem %s8, 4
      %v548 = vld [vmem:[%s547] sm:$0xf]
      %v551 = vunpack.c.l.b16 %v544
      %v552 = vunpack.c.h.b16 %v544
      %v553 = vunpack.c.l.b16 %v545
      %v554 = vpack.c.b16 %v551, %v551
      %v555 = vpack.c.b16 %v552, %v552
      %v556 = vpack.c.b16 %v553, %v553
      %557 = vrot.lane.b32.xlu0 %v554, 127
      %v558 = vpop.permute.xlu0 %557
      %559 = vrot.lane.b32.xlu0 %v555, 127
      %v560 = vpop.permute.xlu0 %559
      %561 = vrot.lane.b32.xlu0 %v556, 127
      %v562 = vpop.permute.xlu0 %561
      %vm563 = vcmask 1039360
      %v564 = vsel %vm563, %v558, %v560
      %v565 = vsel %vm563, %v560, %v562
      %v567 = vsel %vm475, %v548, 0
      %vm569 = vcmask 1043456
      %v571 = vsel %vm569, %v564, 0
      %v574 = vsel %vm569, %v565, 0
      %v577 = vsel %vm569, %v562, 0
      %579 = vmatpush.bf16.msra.mxu0 0
      %580 = vmatpush.bf16.msra.mxu0 0
      %581 = vmatpush.bf16.msra.mxu0 0
      %582 = vmatpush.bf16.msra.mxu0 0
      %583 = vmatpush.bf16.msra.mxu0 0
      %584 = vmatpush.bf16.msra.mxu0 0
      %585 = vmatpush.bf16.msra.mxu0 0
      %586 = vmatpush.bf16.msra.mxu0 %v571
      %587 = vmatmul.bf16.gmra.mxu0 %v567
      %v588 = vpop.f32.mrf.mxu0
      %v589 = vadd.f32 0.0, %v588
      %v590 = vpop.f32.mrf.mxu0
      %591 = vdwg.mxu0
      %592 = vmatpush.bf16.msra.mxu0 0
      %593 = vmatpush.bf16.msra.mxu0 0
      %594 = vmatpush.bf16.msra.mxu0 0
      %595 = vmatpush.bf16.msra.mxu0 0
      %596 = vmatpush.bf16.msra.mxu0 0
      %597 = vmatpush.bf16.msra.mxu0 0
      %598 = vmatpush.bf16.msra.mxu0 0
      %599 = vmatpush.bf16.msra.mxu0 %v574
      %600 = vmatmul.bf16.gmra.mxu0 %v567
      %v601 = vpop.f32.mrf.mxu0
      %v602 = vadd.f32 0.0, %v601
      %v603 = vpop.f32.mrf.mxu0
      %604 = vdwg.mxu0
      %605 = vmatpush.bf16.msra.mxu0 0
      %606 = vmatpush.bf16.msra.mxu0 0
      %607 = vmatpush.bf16.msra.mxu0 0
      %608 = vmatpush.bf16.msra.mxu0 0
      %609 = vmatpush.bf16.msra.mxu0 0
      %610 = vmatpush.bf16.msra.mxu0 0
      %611 = vmatpush.bf16.msra.mxu0 0
      %612 = vmatpush.bf16.msra.mxu0 %v577
      %613 = vmatmul.bf16.gmra.mxu0 %v567
      %v614 = vpop.f32.mrf.mxu0
      %v615 = vadd.f32 0.0, %v614
      %v616 = vpop.f32.mrf.mxu0
      %617 = vdwg.mxu0
      %v619 = vsel %vm475, %v546, 0
      %v622 = vsel %vm569, %v554, 0
      %v625 = vsel %vm569, %v555, 0
      %v628 = vsel %vm569, %v556, 0
      %630 = vmatpush.bf16.msra.mxu0 0
      %631 = vmatpush.bf16.msra.mxu0 0
      %632 = vmatpush.bf16.msra.mxu0 0
      %633 = vmatpush.bf16.msra.mxu0 0
      %634 = vmatpush.bf16.msra.mxu0 0
      %635 = vmatpush.bf16.msra.mxu0 0
      %636 = vmatpush.bf16.msra.mxu0 0
      %637 = vmatpush.bf16.msra.mxu0 %v622
      %638 = vmatmul.bf16.gmra.mxu0 %v619
      %v639 = vpop.f32.mrf.mxu0
      %v640 = vadd.f32 %v589, %v639
      %v641 = vpop.f32.mrf.mxu0
      %642 = vdwg.mxu0
      %643 = vmatpush.bf16.msra.mxu0 0
      %644 = vmatpush.bf16.msra.mxu0 0
      %645 = vmatpush.bf16.msra.mxu0 0
      %646 = vmatpush.bf16.msra.mxu0 0
      %647 = vmatpush.bf16.msra.mxu0 0
      %648 = vmatpush.bf16.msra.mxu0 0
      %649 = vmatpush.bf16.msra.mxu0 0
      %650 = vmatpush.bf16.msra.mxu0 %v625
      %651 = vmatmul.bf16.gmra.mxu0 %v619
      %v652 = vpop.f32.mrf.mxu0
      %v653 = vadd.f32 %v602, %v652
      %v654 = vpop.f32.mrf.mxu0
      %655 = vdwg.mxu0
      %656 = vmatpush.bf16.msra.mxu0 0
      %657 = vmatpush.bf16.msra.mxu0 0
      %658 = vmatpush.bf16.msra.mxu0 0
      %659 = vmatpush.bf16.msra.mxu0 0
      %660 = vmatpush.bf16.msra.mxu0 0
      %661 = vmatpush.bf16.msra.mxu0 0
      %662 = vmatpush.bf16.msra.mxu0 0
      %663 = vmatpush.bf16.msra.mxu0 %v628
      %664 = vmatmul.bf16.gmra.mxu0 %v619
      %v665 = vpop.f32.mrf.mxu0
      %v666 = vadd.f32 %v615, %v665
      %v667 = vpop.f32.mrf.mxu0
      %668 = vdwg.mxu0
      %s669 = scalar_lea.vmem %s8, 8
      %v670 = vld [vmem:[%s669] sm:$0xf]
      %671 = vrot.lane.b32.xlu0 %v554, 126
      %v672 = vpop.permute.xlu0 %671
      %673 = vrot.lane.b32.xlu0 %v555, 126
      %v674 = vpop.permute.xlu0 %673
      %675 = vrot.lane.b32.xlu0 %v556, 126
      %v676 = vpop.permute.xlu0 %675
      %vm677 = vcmask 1031168
      %v678 = vsel %vm677, %v672, %v674
      %v679 = vsel %vm677, %v674, %v676
      %v681 = vsel %vm475, %v670, 0
      %v684 = vsel %vm569, %v678, 0
      %v687 = vsel %vm569, %v679, 0
      %v690 = vsel %vm569, %v676, 0
      %692 = vmatpush.bf16.msra.mxu0 0
      %693 = vmatpush.bf16.msra.mxu0 0
      %694 = vmatpush.bf16.msra.mxu0 0
      %695 = vmatpush.bf16.msra.mxu0 0
      %696 = vmatpush.bf16.msra.mxu0 0
      %697 = vmatpush.bf16.msra.mxu0 0
      %698 = vmatpush.bf16.msra.mxu0 0
      %699 = vmatpush.bf16.msra.mxu0 %v684
      %700 = vmatmul.bf16.gmra.mxu0 %v681
      %v701 = vpop.f32.mrf.mxu0
      %v702 = vadd.f32 0.0, %v701
      %v703 = vpop.f32.mrf.mxu0
      %704 = vdwg.mxu0
      %705 = vmatpush.bf16.msra.mxu0 0
      %706 = vmatpush.bf16.msra.mxu0 0
      %707 = vmatpush.bf16.msra.mxu0 0
      %708 = vmatpush.bf16.msra.mxu0 0
      %709 = vmatpush.bf16.msra.mxu0 0
      %710 = vmatpush.bf16.msra.mxu0 0
      %711 = vmatpush.bf16.msra.mxu0 0
      %712 = vmatpush.bf16.msra.mxu0 %v687
      %713 = vmatmul.bf16.gmra.mxu0 %v681
      %v714 = vpop.f32.mrf.mxu0
      %v715 = vadd.f32 0.0, %v714
      %v716 = vpop.f32.mrf.mxu0
      %717 = vdwg.mxu0
      %718 = vmatpush.bf16.msra.mxu0 0
      %719 = vmatpush.bf16.msra.mxu0 0
      %720 = vmatpush.bf16.msra.mxu0 0
      %721 = vmatpush.bf16.msra.mxu0 0
      %722 = vmatpush.bf16.msra.mxu0 0
      %723 = vmatpush.bf16.msra.mxu0 0
      %724 = vmatpush.bf16.msra.mxu0 0
      %725 = vmatpush.bf16.msra.mxu0 %v690
      %726 = vmatmul.bf16.gmra.mxu0 %v681
      %v727 = vpop.f32.mrf.mxu0
      %v728 = vadd.f32 0.0, %v727
      %v729 = vpop.f32.mrf.mxu0
      %730 = vdwg.mxu0
      %v731 = vadd.f32 %v640, %v702
      %v732 = vadd.f32 %v653, %v715
      %v733 = vadd.f32 %v666, %v728
      %s734 = scalar_lea.vmem %s8, 12
      %v735 = vld [vmem:[%s734] sm:$0xf]
      %736 = vrot.lane.b32.xlu0 %v554, 110
      %v737 = vpop.permute.xlu0 %736
      %738 = vrot.lane.b32.xlu0 %v555, 110
      %v739 = vpop.permute.xlu0 %738
      %740 = vrot.lane.b32.xlu0 %v556, 110
      %v741 = vpop.permute.xlu0 %740
      %vm742 = vcmask 900096
      %v743 = vsel %vm742, %v737, %v739
      %v744 = vsel %vm742, %v739, %v741
      %v746 = vsel %vm475, %v735, 0
      %v749 = vsel %vm569, %v743, 0
      %v752 = vsel %vm569, %v744, 0
      %v755 = vsel %vm569, %v741, 0
      %757 = vmatpush.bf16.msra.mxu0 0
      %758 = vmatpush.bf16.msra.mxu0 0
      %759 = vmatpush.bf16.msra.mxu0 0
      %760 = vmatpush.bf16.msra.mxu0 0
      %761 = vmatpush.bf16.msra.mxu0 0
      %762 = vmatpush.bf16.msra.mxu0 0
      %763 = vmatpush.bf16.msra.mxu0 0
      %764 = vmatpush.bf16.msra.mxu0 %v749
      %765 = vmatmul.bf16.gmra.mxu0 %v746
      %v766 = vpop.f32.mrf.mxu0
      %v767 = vadd.f32 0.0, %v766
      %v768 = vpop.f32.mrf.mxu0
      %769 = vdwg.mxu0
      %770 = vmatpush.bf16.msra.mxu0 0
      %771 = vmatpush.bf16.msra.mxu0 0
      %772 = vmatpush.bf16.msra.mxu0 0
      %773 = vmatpush.bf16.msra.mxu0 0
      %774 = vmatpush.bf16.msra.mxu0 0
      %775 = vmatpush.bf16.msra.mxu0 0
      %776 = vmatpush.bf16.msra.mxu0 0
      %777 = vmatpush.bf16.msra.mxu0 %v752
      %778 = vmatmul.bf16.gmra.mxu0 %v746
      %v779 = vpop.f32.mrf.mxu0
      %v780 = vadd.f32 0.0, %v779
      %v781 = vpop.f32.mrf.mxu0
      %782 = vdwg.mxu0
      %783 = vmatpush.bf16.msra.mxu0 0
      %784 = vmatpush.bf16.msra.mxu0 0
      %785 = vmatpush.bf16.msra.mxu0 0
      %786 = vmatpush.bf16.msra.mxu0 0
      %787 = vmatpush.bf16.msra.mxu0 0
      %788 = vmatpush.bf16.msra.mxu0 0
      %789 = vmatpush.bf16.msra.mxu0 0
      %790 = vmatpush.bf16.msra.mxu0 %v755
      %791 = vmatmul.bf16.gmra.mxu0 %v746
      %v792 = vpop.f32.mrf.mxu0
      %v793 = vadd.f32 0.0, %v792
      %v794 = vpop.f32.mrf.mxu0
      %795 = vdwg.mxu0
      %v796 = vadd.f32 %v731, %v767
      %v797 = vadd.f32 %v732, %v780
      %v798 = vadd.f32 %v733, %v793
      %s799 = scalar_lea.vmem %s8, 16
      %v800 = vld [vmem:[%s799] sm:$0xf]
      %801 = vrot.lane.b32.xlu0 %v554, 109
      %v802 = vpop.permute.xlu0 %801
      %803 = vrot.lane.b32.xlu0 %v555, 109
      %v804 = vpop.permute.xlu0 %803
      %805 = vrot.lane.b32.xlu0 %v556, 109
      %v806 = vpop.permute.xlu0 %805
      %vm807 = vcmask 891904
      %v808 = vsel %vm807, %v802, %v804
      %v809 = vsel %vm807, %v804, %v806
      %v811 = vsel %vm475, %v800, 0
      %v814 = vsel %vm569, %v808, 0
      %v817 = vsel %vm569, %v809, 0
      %v820 = vsel %vm569, %v806, 0
      %822 = vmatpush.bf16.msra.mxu0 0
      %823 = vmatpush.bf16.msra.mxu0 0
      %824 = vmatpush.bf16.msra.mxu0 0
      %825 = vmatpush.bf16.msra.mxu0 0
      %826 = vmatpush.bf16.msra.mxu0 0
      %827 = vmatpush.bf16.msra.mxu0 0
      %828 = vmatpush.bf16.msra.mxu0 0
      %829 = vmatpush.bf16.msra.mxu0 %v814
      %830 = vmatmul.bf16.gmra.mxu0 %v811
      %v831 = vpop.f32.mrf.mxu0
      %v832 = vadd.f32 0.0, %v831
      %v833 = vpop.f32.mrf.mxu0
      %834 = vdwg.mxu0
      %835 = vmatpush.bf16.msra.mxu0 0
      %836 = vmatpush.bf16.msra.mxu0 0
      %837 = vmatpush.bf16.msra.mxu0 0
      %838 = vmatpush.bf16.msra.mxu0 0
      %839 = vmatpush.bf16.msra.mxu0 0
      %840 = vmatpush.bf16.msra.mxu0 0
      %841 = vmatpush.bf16.msra.mxu0 0
      %842 = vmatpush.bf16.msra.mxu0 %v817
      %843 = vmatmul.bf16.gmra.mxu0 %v811
      %v844 = vpop.f32.mrf.mxu0
      %v845 = vadd.f32 0.0, %v844
      %v846 = vpop.f32.mrf.mxu0
      %847 = vdwg.mxu0
      %848 = vmatpush.bf16.msra.mxu0 0
      %849 = vmatpush.bf16.msra.mxu0 0
      %850 = vmatpush.bf16.msra.mxu0 0
      %851 = vmatpush.bf16.msra.mxu0 0
      %852 = vmatpush.bf16.msra.mxu0 0
      %853 = vmatpush.bf16.msra.mxu0 0
      %854 = vmatpush.bf16.msra.mxu0 0
      %855 = vmatpush.bf16.msra.mxu0 %v820
      %856 = vmatmul.bf16.gmra.mxu0 %v811
      %v857 = vpop.f32.mrf.mxu0
      %v858 = vadd.f32 0.0, %v857
      %v859 = vpop.f32.mrf.mxu0
      %860 = vdwg.mxu0
      %v861 = vadd.f32 %v796, %v832
      %v862 = vadd.f32 %v797, %v845
      %v863 = vadd.f32 %v798, %v858
      %s864 = scalar_lea.vmem %s8, 20
      %v865 = vld [vmem:[%s864] sm:$0xf]
      %866 = vrot.lane.b32.xlu0 %v554, 108
      %v867 = vpop.permute.xlu0 %866
      %868 = vrot.lane.b32.xlu0 %v555, 108
      %v869 = vpop.permute.xlu0 %868
      %870 = vrot.lane.b32.xlu0 %v556, 108
      %v871 = vpop.permute.xlu0 %870
      %vm872 = vcmask 883712
      %v873 = vsel %vm872, %v867, %v869
      %v874 = vsel %vm872, %v869, %v871
      %v876 = vsel %vm475, %v865, 0
      %v879 = vsel %vm569, %v873, 0
      %v882 = vsel %vm569, %v874, 0
      %v885 = vsel %vm569, %v871, 0
      %887 = vmatpush.bf16.msra.mxu0 0
      %888 = vmatpush.bf16.msra.mxu0 0
      %889 = vmatpush.bf16.msra.mxu0 0
      %890 = vmatpush.bf16.msra.mxu0 0
      %891 = vmatpush.bf16.msra.mxu0 0
      %892 = vmatpush.bf16.msra.mxu0 0
      %893 = vmatpush.bf16.msra.mxu0 0
      %894 = vmatpush.bf16.msra.mxu0 %v879
      %895 = vmatmul.bf16.gmra.mxu0 %v876
      %v896 = vpop.f32.mrf.mxu0
      %v897 = vadd.f32 0.0, %v896
      %v898 = vpop.f32.mrf.mxu0
      %899 = vdwg.mxu0
      %900 = vmatpush.bf16.msra.mxu0 0
      %901 = vmatpush.bf16.msra.mxu0 0
      %902 = vmatpush.bf16.msra.mxu0 0
      %903 = vmatpush.bf16.msra.mxu0 0
      %904 = vmatpush.bf16.msra.mxu0 0
      %905 = vmatpush.bf16.msra.mxu0 0
      %906 = vmatpush.bf16.msra.mxu0 0
      %907 = vmatpush.bf16.msra.mxu0 %v882
      %908 = vmatmul.bf16.gmra.mxu0 %v876
      %v909 = vpop.f32.mrf.mxu0
      %v910 = vadd.f32 0.0, %v909
      %v911 = vpop.f32.mrf.mxu0
      %912 = vdwg.mxu0
      %913 = vmatpush.bf16.msra.mxu0 0
      %914 = vmatpush.bf16.msra.mxu0 0
      %915 = vmatpush.bf16.msra.mxu0 0
      %916 = vmatpush.bf16.msra.mxu0 0
      %917 = vmatpush.bf16.msra.mxu0 0
      %918 = vmatpush.bf16.msra.mxu0 0
      %919 = vmatpush.bf16.msra.mxu0 0
      %920 = vmatpush.bf16.msra.mxu0 %v885
      %921 = vmatmul.bf16.gmra.mxu0 %v876
      %v922 = vpop.f32.mrf.mxu0
      %v923 = vadd.f32 0.0, %v922
      %v924 = vpop.f32.mrf.mxu0
      %925 = vdwg.mxu0
      %v926 = vadd.f32 %v861, %v897
      %v927 = vadd.f32 %v862, %v910
      %v928 = vadd.f32 %v863, %v923
      %s929 = scalar_lea.vmem %s8, 24
      %v930 = vld [vmem:[%s929] sm:$0xf]
      %931 = vrot.lane.b32.xlu0 %v554, 92
      %v932 = vpop.permute.xlu0 %931
      %933 = vrot.lane.b32.xlu0 %v555, 92
      %v934 = vpop.permute.xlu0 %933
      %935 = vrot.lane.b32.xlu0 %v556, 92
      %v936 = vpop.permute.xlu0 %935
      %vm937 = vcmask 752640
      %v938 = vsel %vm937, %v932, %v934
      %v939 = vsel %vm937, %v934, %v936
      %v941 = vsel %vm475, %v930, 0
      %v944 = vsel %vm569, %v938, 0
      %v947 = vsel %vm569, %v939, 0
      %v950 = vsel %vm569, %v936, 0
      %952 = vmatpush.bf16.msra.mxu0 0
      %953 = vmatpush.bf16.msra.mxu0 0
      %954 = vmatpush.bf16.msra.mxu0 0
      %955 = vmatpush.bf16.msra.mxu0 0
      %956 = vmatpush.bf16.msra.mxu0 0
      %957 = vmatpush.bf16.msra.mxu0 0
      %958 = vmatpush.bf16.msra.mxu0 0
      %959 = vmatpush.bf16.msra.mxu0 %v944
      %960 = vmatmul.bf16.gmra.mxu0 %v941
      %v961 = vpop.f32.mrf.mxu0
      %v962 = vadd.f32 0.0, %v961
      %v963 = vpop.f32.mrf.mxu0
      %964 = vdwg.mxu0
      %965 = vmatpush.bf16.msra.mxu0 0
      %966 = vmatpush.bf16.msra.mxu0 0
      %967 = vmatpush.bf16.msra.mxu0 0
      %968 = vmatpush.bf16.msra.mxu0 0
      %969 = vmatpush.bf16.msra.mxu0 0
      %970 = vmatpush.bf16.msra.mxu0 0
      %971 = vmatpush.bf16.msra.mxu0 0
      %972 = vmatpush.bf16.msra.mxu0 %v947
      %973 = vmatmul.bf16.gmra.mxu0 %v941
      %v974 = vpop.f32.mrf.mxu0
      %v975 = vadd.f32 0.0, %v974
      %v976 = vpop.f32.mrf.mxu0
      %977 = vdwg.mxu0
      %978 = vmatpush.bf16.msra.mxu0 0
      %979 = vmatpush.bf16.msra.mxu0 0
      %980 = vmatpush.bf16.msra.mxu0 0
      %981 = vmatpush.bf16.msra.mxu0 0
      %982 = vmatpush.bf16.msra.mxu0 0
      %983 = vmatpush.bf16.msra.mxu0 0
      %984 = vmatpush.bf16.msra.mxu0 0
      %985 = vmatpush.bf16.msra.mxu0 %v950
      %986 = vmatmul.bf16.gmra.mxu0 %v941
      %v987 = vpop.f32.mrf.mxu0
      %v988 = vadd.f32 0.0, %v987
      %v989 = vpop.f32.mrf.mxu0
      %990 = vdwg.mxu0
      %v991 = vadd.f32 %v926, %v962
      %v992 = vadd.f32 %v927, %v975
      %v993 = vadd.f32 %v928, %v988
      %s994 = scalar_lea.vmem %s8, 28
      %v995 = vld [vmem:[%s994] sm:$0xf]
      %996 = vrot.lane.b32.xlu0 %v554, 91
      %v997 = vpop.permute.xlu0 %996
      %998 = vrot.lane.b32.xlu0 %v555, 91
      %v999 = vpop.permute.xlu0 %998
      %1000 = vrot.lane.b32.xlu0 %v556, 91
      %v1001 = vpop.permute.xlu0 %1000
      %vm1002 = vcmask 744448
      %v1003 = vsel %vm1002, %v997, %v999
      %v1004 = vsel %vm1002, %v999, %v1001
      %v1006 = vsel %vm475, %v995, 0
      %v1009 = vsel %vm569, %v1003, 0
      %v1012 = vsel %vm569, %v1004, 0
      %v1015 = vsel %vm569, %v1001, 0
      %1017 = vmatpush.bf16.msra.mxu0 0
      %1018 = vmatpush.bf16.msra.mxu0 0
      %1019 = vmatpush.bf16.msra.mxu0 0
      %1020 = vmatpush.bf16.msra.mxu0 0
      %1021 = vmatpush.bf16.msra.mxu0 0
      %1022 = vmatpush.bf16.msra.mxu0 0
      %1023 = vmatpush.bf16.msra.mxu0 0
      %1024 = vmatpush.bf16.msra.mxu0 %v1009
      %1025 = vmatmul.bf16.gmra.mxu0 %v1006
      %v1026 = vpop.f32.mrf.mxu0
      %v1027 = vadd.f32 0.0, %v1026
      %v1028 = vpop.f32.mrf.mxu0
      %1029 = vdwg.mxu0
      %1030 = vmatpush.bf16.msra.mxu0 0
      %1031 = vmatpush.bf16.msra.mxu0 0
      %1032 = vmatpush.bf16.msra.mxu0 0
      %1033 = vmatpush.bf16.msra.mxu0 0
      %1034 = vmatpush.bf16.msra.mxu0 0
      %1035 = vmatpush.bf16.msra.mxu0 0
      %1036 = vmatpush.bf16.msra.mxu0 0
      %1037 = vmatpush.bf16.msra.mxu0 %v1012
      %1038 = vmatmul.bf16.gmra.mxu0 %v1006
      %v1039 = vpop.f32.mrf.mxu0
      %v1040 = vadd.f32 0.0, %v1039
      %v1041 = vpop.f32.mrf.mxu0
      %1042 = vdwg.mxu0
      %1043 = vmatpush.bf16.msra.mxu0 0
      %1044 = vmatpush.bf16.msra.mxu0 0
      %1045 = vmatpush.bf16.msra.mxu0 0
      %1046 = vmatpush.bf16.msra.mxu0 0
      %1047 = vmatpush.bf16.msra.mxu0 0
      %1048 = vmatpush.bf16.msra.mxu0 0
      %1049 = vmatpush.bf16.msra.mxu0 0
      %1050 = vmatpush.bf16.msra.mxu0 %v1015
      %1051 = vmatmul.bf16.gmra.mxu0 %v1006
      %v1052 = vpop.f32.mrf.mxu0
      %v1053 = vadd.f32 0.0, %v1052
      %v1054 = vpop.f32.mrf.mxu0
      %1055 = vdwg.mxu0
      %v1056 = vadd.f32 %v991, %v1027
      %v1057 = vadd.f32 %v992, %v1040
      %v1058 = vadd.f32 %v993, %v1053
      %s1059 = scalar_lea.vmem %s8, 32
      %v1060 = vld [vmem:[%s1059] sm:$0xf]
      %1061 = vrot.lane.b32.xlu0 %v554, 90
      %v1062 = vpop.permute.xlu0 %1061
      %1063 = vrot.lane.b32.xlu0 %v555, 90
      %v1064 = vpop.permute.xlu0 %1063
      %1065 = vrot.lane.b32.xlu0 %v556, 90
      %v1066 = vpop.permute.xlu0 %1065
      %vm1067 = vcmask 736256
      %v1068 = vsel %vm1067, %v1062, %v1064
      %v1069 = vsel %vm1067, %v1064, %v1066
      %v1071 = vsel %vm475, %v1060, 0
      %v1074 = vsel %vm569, %v1068, 0
      %v1077 = vsel %vm569, %v1069, 0
      %v1080 = vsel %vm569, %v1066, 0
      %1082 = vmatpush.bf16.msra.mxu0 0
      %1083 = vmatpush.bf16.msra.mxu0 0
      %1084 = vmatpush.bf16.msra.mxu0 0
      %1085 = vmatpush.bf16.msra.mxu0 0
      %1086 = vmatpush.bf16.msra.mxu0 0
      %1087 = vmatpush.bf16.msra.mxu0 0
      %1088 = vmatpush.bf16.msra.mxu0 0
      %1089 = vmatpush.bf16.msra.mxu0 %v1074
      %1090 = vmatmul.bf16.gmra.mxu0 %v1071
      %v1091 = vpop.f32.mrf.mxu0
      %v1092 = vadd.f32 0.0, %v1091
      %v1093 = vpop.f32.mrf.mxu0
      %1094 = vdwg.mxu0
      %1095 = vmatpush.bf16.msra.mxu0 0
      %1096 = vmatpush.bf16.msra.mxu0 0
      %1097 = vmatpush.bf16.msra.mxu0 0
      %1098 = vmatpush.bf16.msra.mxu0 0
      %1099 = vmatpush.bf16.msra.mxu0 0
      %1100 = vmatpush.bf16.msra.mxu0 0
      %1101 = vmatpush.bf16.msra.mxu0 0
      %1102 = vmatpush.bf16.msra.mxu0 %v1077
      %1103 = vmatmul.bf16.gmra.mxu0 %v1071
      %v1104 = vpop.f32.mrf.mxu0
      %v1105 = vadd.f32 0.0, %v1104
      %v1106 = vpop.f32.mrf.mxu0
      %1107 = vdwg.mxu0
      %1108 = vmatpush.bf16.msra.mxu0 0
      %1109 = vmatpush.bf16.msra.mxu0 0
      %1110 = vmatpush.bf16.msra.mxu0 0
      %1111 = vmatpush.bf16.msra.mxu0 0
      %1112 = vmatpush.bf16.msra.mxu0 0
      %1113 = vmatpush.bf16.msra.mxu0 0
      %1114 = vmatpush.bf16.msra.mxu0 0
      %1115 = vmatpush.bf16.msra.mxu0 %v1080
      %1116 = vmatmul.bf16.gmra.mxu0 %v1071
      %v1117 = vpop.f32.mrf.mxu0
      %v1118 = vadd.f32 0.0, %v1117
      %v1119 = vpop.f32.mrf.mxu0
      %1120 = vdwg.mxu0
      %v1121 = vadd.f32 %v1056, %v1092
      %v1122 = vadd.f32 %v1057, %v1105
      %v1123 = vadd.f32 %v1058, %v1118
      %v1124 = vld [vmem:[%s9] sm:$0xff]
      %1126 = vset.pattern.permute.xlu0 0
      %1127 = vperm.xlu0 %1126, %v1124
      %v1128 = vpop.permute.xlu0 %1127
      %v1130 = vadd.f32 %v1121, %v1128
      %v1131 = vadd.f32 %v1122, %v1128
      %v1132 = vadd.f32 %v1123, %v1128
      %v1133 = vmax.f32 %v1130, 0.0
      %v1134 = vmax.f32 %v1131, 0.0
      %v1135 = vmax.f32 %v1132, 0.0
      %v1136 = vld [vmem:[%s10] sm:$0xff]
      %v1137 = vld [vmem:[%s11] sm:$0xff]
      %1139 = vset.pattern.permute.xlu0 0
      %1140 = vperm.xlu0 %1139, %v1137
      %v1141 = vpop.permute.xlu0 %1140
      %v1144 = vsel %vm475, %v1136, 0
      %1146 = vmatpush.msra.mxu0 0.0
      %1147 = vmatpush.msra.mxu0 0.0
      %1148 = vmatpush.msra.mxu0 0.0
      %1149 = vmatpush.msra.mxu0 0.0
      %1150 = vmatpush.msra.mxu0 0.0
      %1151 = vmatpush.msra.mxu0 0.0
      %1152 = vmatpush.msra.mxu0 0.0
      %1153 = vmatpush.msra.mxu0 0.0
      %1154 = vmatpush.msra.mxu0 0.0
      %1155 = vmatpush.msra.mxu0 0.0
      %1156 = vmatpush.msra.mxu0 0.0
      %1157 = vmatpush.msra.mxu0 0.0
      %1158 = vmatpush.msra.mxu0 0.0
      %1159 = vmatpush.msra.mxu0 0.0
      %1160 = vmatpush.msra.mxu0 0.0
      %1161 = vmatpush.msra.mxu0 %v1133
      %1162 = vmatmul.f32.gmra.mxu0 %v1144
      %v1163 = vpop.f32.mrf.mxu0
      %v1164 = vadd.f32 %v1141, %v1163
      %1165 = vdwg.mxu0
      %1166 = vmatpush.msra.mxu0 0.0
      %1167 = vmatpush.msra.mxu0 0.0
      %1168 = vmatpush.msra.mxu0 0.0
      %1169 = vmatpush.msra.mxu0 0.0
      %1170 = vmatpush.msra.mxu0 0.0
      %1171 = vmatpush.msra.mxu0 0.0
      %1172 = vmatpush.msra.mxu0 0.0
      %1173 = vmatpush.msra.mxu0 0.0
      %1174 = vmatpush.msra.mxu0 0.0
      %1175 = vmatpush.msra.mxu0 0.0
      %1176 = vmatpush.msra.mxu0 0.0
      %1177 = vmatpush.msra.mxu0 0.0
      %1178 = vmatpush.msra.mxu0 0.0
      %1179 = vmatpush.msra.mxu0 0.0
      %1180 = vmatpush.msra.mxu0 0.0
      %1181 = vmatpush.msra.mxu0 %v1134
      %1182 = vmatmul.f32.gmra.mxu0 %v1144
      %v1183 = vpop.f32.mrf.mxu0
      %v1184 = vadd.f32 %v1141, %v1183
      %1185 = vdwg.mxu0
      %1186 = vmatpush.msra.mxu0 0.0
      %1187 = vmatpush.msra.mxu0 0.0
      %1188 = vmatpush.msra.mxu0 0.0
      %1189 = vmatpush.msra.mxu0 0.0
      %1190 = vmatpush.msra.mxu0 0.0
      %1191 = vmatpush.msra.mxu0 0.0
      %1192 = vmatpush.msra.mxu0 0.0
      %1193 = vmatpush.msra.mxu0 0.0
      %1194 = vmatpush.msra.mxu0 0.0
      %1195 = vmatpush.msra.mxu0 0.0
      %1196 = vmatpush.msra.mxu0 0.0
      %1197 = vmatpush.msra.mxu0 0.0
      %1198 = vmatpush.msra.mxu0 0.0
      %1199 = vmatpush.msra.mxu0 0.0
      %1200 = vmatpush.msra.mxu0 0.0
      %1201 = vmatpush.msra.mxu0 %v1135
      %1202 = vmatmul.f32.gmra.mxu0 %v1144
      %v1203 = vpop.f32.mrf.mxu0
      %v1204 = vadd.f32 %v1141, %v1203
      %1205 = vdwg.mxu0
      %1207 = vset.pattern.permute.xlu0 0
      %1208 = vperm.xlu0 %1207, %v543
      %v1209 = vpop.permute.xlu0 %1208
      %v1211 = vmul.f32 %v1164, %v1209
      %v1212 = vmul.f32 %v1184, %v1209
      %v1213 = vmul.f32 %v1204, %v1209
      %1214 = vst [vmem:[%s433] sm:$0xff] %v1211
      %1215 = vst [vmem:[%s433 + $0x8] sm:$0xff] %v1212
      %vm1216 = vcmask 261120
      %1217 = vst.msk [vmem:[%s433 + $0x10] sm:$0xff] %vm1216, %v1213
      %p1218 = scmp.lt.s32.totalorder %s23, 1
      %s1219 = scalar_select %p1218, %s23, 1
      %s1220 = smul.addr %s1219, 3
      %s1221 = smul.addr %s1220, 8
      %s1222 = scalar_lea.vmem %s12, %s1221
      // Predicated region
      $region69: #{sspa_forward.1} parent=67 // pred_check
        %p1223 = pneg %p303
      $region70: #{sspa_forward.1} parent=67 // pred_check_branch
        %1225 = sbr.rel (%p1223) target = $region72
      $region71: #{sspa_forward.1} parent=67 // pred_region
        _
      $region72: #{sspa_forward.1} parent=67 // pred_fallthru
        _
    $region68: #{sspa_forward.1} parent=5 // pred_fallthru
      _
    %p1226 = scmp.le.s32.totalorder 2, %s18
    // Predicated region
    $region73: #{sspa_forward.1} parent=5 // pred_check
      %p1227 = pneg %p1226
    $region74: #{sspa_forward.1} parent=5 // pred_check_branch
      %1229 = sbr.rel (%p1227) target = $region76
    $region75: #{sspa_forward.1} parent=5 // pred_region
      %s1230 = ssub.s32 %s18, 2
      // Predicated region
      $region77: #{sspa_forward.1} parent=75 // pred_check
        %p1231 = pneg %p309
      $region78: #{sspa_forward.1} parent=75 // pred_check_branch
        %1233 = sbr.rel (%p1231) target = $region80
      $region79: #{sspa_forward.1} parent=75 // pred_region
        %p1234 = scmp.lt.s32.totalorder %s24, 1
        %s1235 = scalar_select %p1234, %s24, 1
        %s1236 = smul.addr %s1235, 3
        %s1237 = smul.addr %s1236, 8
        %s1238 = scalar_lea.vmem %s12, %s1237
      $region80: #{sspa_forward.1} parent=75 // pred_fallthru
        _
    $region76: #{sspa_forward.1} parent=5 // pred_fallthru
      _
  $region6: #{sspa_forward.1} parent=0 // loop_footer
    %s22 = sadd.s32 1, %s18
  $region7: #{sspa_forward.1} parent=0 // loop_footer_branch
    %17 = sbr.rel target = $region3
  $region8: #{sspa_forward.1} parent=0 // loop_exit
    _

</llo_original>
